<compile_context>
chip_gen: v7x
topology: tpu7x:2x2x1
jax: 0.10.0
libtpu: 0.0.40
codegen_flags: <defaults>
</compile_context>

<pallas_src>
import functools
import math

import jax
import jax.numpy as jnp
from jax.experimental import pallas as pl
from jax.experimental.pallas import tpu as pltpu


PARAM_ORDER = (
    "ln1_g", "ln1_b",
    "wq", "bq", "wk", "bk", "wv", "bv",
    "wo", "bo",
    "ln2_g", "ln2_b",
    "wi", "bi", "wo2", "bo2",
)

_MATMUL_DTYPE = jnp.bfloat16   # native MXU operand dtype on v5e/v6e/v7x


# ---------------------------------------------------------------------------
# Shared per-layer math on plain arrays (used by the kernel body AND the
# pure-JAX reference so the numerics are identical).
#   x: (S, H) float32; matmul weights pre-transposed to (in, out), bf16.
# ---------------------------------------------------------------------------
def _layer_math(x, ln1_g, ln1_b, wq, bq, wk, bk, wv, bv, wo, bo,
                ln2_g, ln2_b, wi, bi, wo2, bo2, *,
                num_heads, head_dim, eps, q_tile, approx_recip):
    f32 = jnp.float32
    mm = _MATMUL_DTYPE
    S, H = x.shape

    def layer_norm(v, g, b):
        mu = jnp.mean(v, axis=-1, keepdims=True)
        vc = v - mu
        var = jnp.mean(vc * vc, axis=-1, keepdims=True)
        return vc * jax.lax.rsqrt(var + eps) * g + b

    def recip(v):
        # EUP reciprocal inside the kernel; exact divide in the XLA reference.
        return pl.reciprocal(v, approx=True) if approx_recip else 1.0 / v

    # --- layernorm_before (f32 statistics) ---
    ln1 = layer_norm(x, ln1_g, ln1_b)
    ln1_mm = ln1.astype(mm)

    # --- QKV projections: bf16 operands, f32 accumulation ---
    q = jnp.dot(ln1_mm, wq, preferred_element_type=f32) + bq
    k = jnp.dot(ln1_mm, wk, preferred_element_type=f32) + bk
    v = jnp.dot(ln1_mm, wv, preferred_element_type=f32) + bv

    # One head-major relayout per tensor (replaces per-head lane slices).
    def to_heads(t):   # (S, H) -> (nh, S, dh)
        return jnp.transpose(
            t.reshape(S, num_heads, head_dim), (1, 0, 2)).astype(mm)

    q_h = to_heads(q)
    k_h = to_heads(k)
    v_h = to_heads(v)

    scale = 1.0 / math.sqrt(head_dim)

    # Query-tile loop bounds the live (nh, tq, S) score block at larger S.
    # TODO(synk): convert to a grid axis + online softmax for production S.
    n_t = S // q_tile
    ctx_tiles = []
    for t in range(n_t):
        q_t = q_h[:, t * q_tile:(t + 1) * q_tile, :]
        s = jnp.einsum("hqd,hkd->hqk", q_t, k_h,
                       preferred_element_type=f32) * scale        # (nh, tq, S)
        s = s - jnp.max(s, axis=-1, keepdims=True)
        p = jnp.exp(s)
        p = p * recip(jnp.sum(p, axis=-1, keepdims=True))
        # TODO(synk): attention-prob dropout / head_mask skipped (inference).
        ctx_tiles.append(jnp.einsum("hqk,hkd->hqd", p.astype(mm), v_h,
                                    preferred_element_type=f32))   # (nh, tq, dh)
    ctx = ctx_tiles[0] if n_t == 1 else jnp.concatenate(ctx_tiles, axis=1)

    # Merge heads back onto the lane axis; single full-width K=H out-proj.
    ctx = jnp.transpose(ctx, (1, 0, 2)).reshape(S, H)
    attn_out = jnp.dot(ctx.astype(mm), wo, preferred_element_type=f32) + bo

    # --- residual 1 (GEXTLayer: attention_output + hidden_states), f32 ---
    h1 = attn_out + x

    # --- layernorm_after + FFN ---
    ln2 = layer_norm(h1, ln2_g, ln2_b)
    inter = jnp.dot(ln2.astype(mm), wi, preferred_element_type=f32) + bi
    # TODO(synk): config.hidden_act assumed "gelu"; tanh-approximate GELU used.
    inter = jax.nn.gelu(inter, approximate=True)
    out = jnp.dot(inter.astype(mm), wo2, preferred_element_type=f32) + bo2 + h1
    return out


# ---------------------------------------------------------------------------
# Pallas kernel: one fully fused transformer layer, one batch element per
# grid step.
# ---------------------------------------------------------------------------
def _gext_layer_kernel(*refs, num_heads, head_dim, eps, q_tile):
    # refs = [x_ref, <16 param refs in PARAM_ORDER>, o_ref]
    x_ref = refs[0]
    param_refs = refs[1:-1]
    o_ref = refs[-1]

    x = x_ref[0].astype(jnp.float32)          # (S, H)
    out = _layer_math(
        x, *[r[...] for r in param_refs],
        num_heads=num_heads, head_dim=head_dim, eps=eps,
        q_tile=q_tile, approx_recip=True)
    o_ref[0] = out.astype(o_ref.dtype)


def gext_layer_forward(hidden_states, params, *, num_heads, eps):
    """One GEXTLayer forward: (B, S, H) -> (B, S, H)."""
    B, S, H = hidden_states.shape
    head_dim = H // num_heads
    inter_dim = params["wi"].shape[1]

    q_tile = S if S <= 128 else 128
    if S % q_tile:
        q_tile = S                      # fallback: no internal query tiling

    def rep_spec(arr):
        # Full-array block, constant index_map -> stays VMEM-resident across
        # grid steps (DMA'd once).  TODO(synk): for v7x-sized H/I also pass
        # pipeline_mode=pl.Buffered(1) so weights are not double-buffered.
        nd = arr.ndim
        return pl.BlockSpec(arr.shape, lambda b, _nd=nd: (0,) * _nd)

    x_spec = pl.BlockSpec((1, S, H), lambda b: (b, 0, 0))
    param_arrays = [params[k] for k in PARAM_ORDER]

    # Advisory cost so XLA can schedule / overlap around this custom call.
    flops = B * (8 * S * H * H + 4 * S * S * H + 4 * S * H * inter_dim)
    transcendentals = B * (num_heads * S * S + S * inter_dim)
    bytes_accessed = (2 * hidden_states.size * hidden_states.dtype.itemsize
                      + sum(a.size * a.dtype.itemsize for a in param_arrays))

    kernel = functools.partial(_gext_layer_kernel,
                               num_heads=num_heads, head_dim=head_dim,
                               eps=eps, q_tile=q_tile)

    return pl.pallas_call(
        kernel,
        out_shape=jax.ShapeDtypeStruct((B, S, H), hidden_states.dtype),
        grid=(B,),
        in_specs=[x_spec] + [rep_spec(a) for a in param_arrays],
        out_specs=x_spec,
        input_output_aliases={0: 0},     # layer output reuses the x buffer
        cost_estimate=pl.CostEstimate(flops=flops,
                                      transcendentals=transcendentals,
                                      bytes_accessed=bytes_accessed),
        compiler_params=pltpu.CompilerParams(
            dimension_semantics=("parallel",),
            # Raise the scoped-VMEM default (16/32 MiB) so VMEM-resident
            # weights fit at realistic H/I; stays within v7x's 64 MiB.
            vmem_limit_bytes=64 * 1024 * 1024),
    )(hidden_states, *param_arrays)


# ---------------------------------------------------------------------------
# Encoder wrapper (stack of layers) + pure-JAX reference.
# ---------------------------------------------------------------------------
class GEXTEncoder:
    def __init__(self, layer_params, *, num_heads, eps=1e-12):
        self.layer_params = layer_params   # list of per-layer param dicts
        self.num_heads = num_heads
        self.eps = eps

    def forward(self, hidden_states, head_mask=None):
        assert head_mask is None  # TODO(synk): head_mask not supported
        # TODO(synk): cross-call DMA futures could prefetch layer i+1 weights
        # behind layer i's compute; not implemented here.
        for p in self.layer_params:
            hidden_states = gext_layer_forward(
                hidden_states, p, num_heads=self.num_heads, eps=self.eps)
        return hidden_states      # == BaseModelOutput.last_hidden_state

    __call__ = forward


def gext_layer_ref(hidden_states, params, *, num_heads, eps):
    S, H = hidden_states.shape[1], hidden_states.shape[2]
    head_dim = H // num_heads
    q_tile = S if S <= 128 else 128
    if S % q_tile:
        q_tile = S

    def per_batch(x):
        return _layer_math(x.astype(jnp.float32),
                           *[params[k] for k in PARAM_ORDER],
                           num_heads=num_heads, head_dim=head_dim, eps=eps,
                           q_tile=q_tile, approx_recip=False)

    return jax.vmap(per_batch)(hidden_states).astype(hidden_states.dtype)


def init_params(key, num_layers, hidden, intermediate):
    layers = []
    for li in range(num_layers):
        ks = jax.random.split(jax.random.fold_in(key, li), 12)

        def lin_w(k, din, dout):
            # stored pre-transposed (in, out) and in bf16 (MXU operand dtype).
            w = jax.random.normal(k, (din, dout), jnp.float32) / math.sqrt(din)
            return w.astype(_MATMUL_DTYPE)

        def bias(k, d):
            return jax.random.normal(k, (1, d), jnp.float32) * 0.02

        layers.append({
            "ln1_g": jnp.ones((1, hidden), jnp.float32),
            "ln1_b": jnp.zeros((1, hidden), jnp.float32),
            "wq": lin_w(ks[0], hidden, hidden), "bq": bias(ks[1], hidden),
            "wk": lin_w(ks[2], hidden, hidden), "bk": bias(ks[3], hidden),
            "wv": lin_w(ks[4], hidden, hidden), "bv": bias(ks[5], hidden),
            "wo": lin_w(ks[6], hidden, hidden), "bo": bias(ks[7], hidden),
            "ln2_g": jnp.ones((1, hidden), jnp.float32),
            "ln2_b": jnp.zeros((1, hidden), jnp.float32),
            "wi": lin_w(ks[8], hidden, intermediate),
            "bi": bias(ks[9], intermediate),
            "wo2": lin_w(ks[10], intermediate, hidden),
            "bo2": bias(ks[11], hidden),
        })
    return layers


if __name__ == "__main__":
    key = jax.random.PRNGKey(0)
    # Small demo shapes; H and I kept multiples of 128 for lane-dense I/O.
    B, S, H, I = 2, 8, 128, 256
    NUM_HEADS, NUM_LAYERS, EPS = 4, 2, 1e-12

    k_x, k_p = jax.random.split(key)
    x = jax.random.normal(k_x, (B, S, H), dtype=jnp.float32)
    params = init_params(k_p, NUM_LAYERS, H, I)

    encoder = GEXTEncoder(params, num_heads=NUM_HEADS, eps=EPS)

    @jax.jit
    def fwd(h):
        return encoder(h)

    y = jax.block_until_ready(fwd(x))

    # Pure-JAX reference of the same encoder stack (identical bf16 boundary
    # casts; exact reciprocal instead of the kernel's approx EUP reciprocal).
    y_ref = x
    for p in params:
        y_ref = gext_layer_ref(y_ref, p, num_heads=NUM_HEADS, eps=EPS)
    y_ref = jax.block_until_ready(y_ref)

    assert y.shape == (B, S, H)
    max_err = float(jnp.max(jnp.abs(y - y_ref)))
    assert bool(jnp.allclose(y, y_ref, rtol=2e-2, atol=2e-2)), max_err
    print("KERNEL_OK")
</pallas_src>

<mosaic_0001>
module attributes {stable_mosaic.version = 11 : i64} {
  func.func @_gext_layer_kernel(%arg0: i32, %arg1: memref<1x8x128xf32, #tpu.memory_space<vmem>>, %arg2: memref<1x128xf32, #tpu.memory_space<vmem>>, %arg3: memref<1x128xf32, #tpu.memory_space<vmem>>, %arg4: memref<128x128xbf16, #tpu.memory_space<vmem>>, %arg5: memref<1x128xf32, #tpu.memory_space<vmem>>, %arg6: memref<128x128xbf16, #tpu.memory_space<vmem>>, %arg7: memref<1x128xf32, #tpu.memory_space<vmem>>, %arg8: memref<128x128xbf16, #tpu.memory_space<vmem>>, %arg9: memref<1x128xf32, #tpu.memory_space<vmem>>, %arg10: memref<128x128xbf16, #tpu.memory_space<vmem>>, %arg11: memref<1x128xf32, #tpu.memory_space<vmem>>, %arg12: memref<1x128xf32, #tpu.memory_space<vmem>>, %arg13: memref<1x128xf32, #tpu.memory_space<vmem>>, %arg14: memref<128x256xbf16, #tpu.memory_space<vmem>>, %arg15: memref<1x256xf32, #tpu.memory_space<vmem>>, %arg16: memref<256x128xbf16, #tpu.memory_space<vmem>>, %arg17: memref<1x128xf32, #tpu.memory_space<vmem>>, %arg18: memref<1x8x128xf32, #tpu.memory_space<vmem>>) attributes {dimension_semantics = [#tpu.dimension_semantics<parallel>], iteration_bounds = array<i64: 2>, scalar_prefetch = 0 : i64, scratch_operands = 0 : i64, tpu.core_type = #tpu.core_type<tc>, window_params = [{transform_indices = @transform_0, window_bounds = array<i64: 1, 8, 128>}, {pipeline_mode = #tpu.pipeline_mode<synchronous>, transform_indices = @transform_1, window_bounds = array<i64: 1, 128>}, {pipeline_mode = #tpu.pipeline_mode<synchronous>, transform_indices = @transform_2, window_bounds = array<i64: 1, 128>}, {pipeline_mode = #tpu.pipeline_mode<synchronous>, transform_indices = @transform_3, window_bounds = array<i64: 128, 128>}, {pipeline_mode = #tpu.pipeline_mode<synchronous>, transform_indices = @transform_4, window_bounds = array<i64: 1, 128>}, {pipeline_mode = #tpu.pipeline_mode<synchronous>, transform_indices = @transform_5, window_bounds = array<i64: 128, 128>}, {pipeline_mode = #tpu.pipeline_mode<synchronous>, transform_indices = @transform_6, window_bounds = array<i64: 1, 128>}, {pipeline_mode = #tpu.pipeline_mode<synchronous>, transform_indices = @transform_7, window_bounds = array<i64: 128, 128>}, {pipeline_mode = #tpu.pipeline_mode<synchronous>, transform_indices = @transform_8, window_bounds = array<i64: 1, 128>}, {pipeline_mode = #tpu.pipeline_mode<synchronous>, transform_indices = @transform_9, window_bounds = array<i64: 128, 128>}, {pipeline_mode = #tpu.pipeline_mode<synchronous>, transform_indices = @transform_10, window_bounds = array<i64: 1, 128>}, {pipeline_mode = #tpu.pipeline_mode<synchronous>, transform_indices = @transform_11, window_bounds = array<i64: 1, 128>}, {pipeline_mode = #tpu.pipeline_mode<synchronous>, transform_indices = @transform_12, window_bounds = array<i64: 1, 128>}, {pipeline_mode = #tpu.pipeline_mode<synchronous>, transform_indices = @transform_13, window_bounds = array<i64: 128, 256>}, {pipeline_mode = #tpu.pipeline_mode<synchronous>, transform_indices = @transform_14, window_bounds = array<i64: 1, 256>}, {pipeline_mode = #tpu.pipeline_mode<synchronous>, transform_indices = @transform_15, window_bounds = array<i64: 256, 128>}, {pipeline_mode = #tpu.pipeline_mode<synchronous>, transform_indices = @transform_16, window_bounds = array<i64: 1, 128>}, {transform_indices = @transform_17, window_bounds = array<i64: 1, 8, 128>}]} {
    %c0 = arith.constant 0 : index
    %c0_0 = arith.constant 0 : index
    %c0_1 = arith.constant 0 : index
    %0 = vector.load %arg1[%c0, %c0_0, %c0_1] : memref<1x8x128xf32, #tpu.memory_space<vmem>>, vector<1x8x128xf32>
    %1 = vector.shape_cast %0 : vector<1x8x128xf32> to vector<8x128xf32>
    %c0_2 = arith.constant 0 : index
    %c0_3 = arith.constant 0 : index
    %2 = vector.load %arg2[%c0_2, %c0_3] : memref<1x128xf32, #tpu.memory_space<vmem>>, vector<1x128xf32>
    %c0_4 = arith.constant 0 : index
    %c0_5 = arith.constant 0 : index
    %3 = vector.load %arg3[%c0_4, %c0_5] : memref<1x128xf32, #tpu.memory_space<vmem>>, vector<1x128xf32>
    %c0_6 = arith.constant 0 : index
    %c0_7 = arith.constant 0 : index
    %4 = vector.load %arg4[%c0_6, %c0_7] : memref<128x128xbf16, #tpu.memory_space<vmem>>, vector<128x128xbf16>
    %c0_8 = arith.constant 0 : index
    %c0_9 = arith.constant 0 : index
    %5 = vector.load %arg5[%c0_8, %c0_9] : memref<1x128xf32, #tpu.memory_space<vmem>>, vector<1x128xf32>
    %c0_10 = arith.constant 0 : index
    %c0_11 = arith.constant 0 : index
    %6 = vector.load %arg6[%c0_10, %c0_11] : memref<128x128xbf16, #tpu.memory_space<vmem>>, vector<128x128xbf16>
    %c0_12 = arith.constant 0 : index
    %c0_13 = arith.constant 0 : index
    %7 = vector.load %arg7[%c0_12, %c0_13] : memref<1x128xf32, #tpu.memory_space<vmem>>, vector<1x128xf32>
    %c0_14 = arith.constant 0 : index
    %c0_15 = arith.constant 0 : index
    %8 = vector.load %arg8[%c0_14, %c0_15] : memref<128x128xbf16, #tpu.memory_space<vmem>>, vector<128x128xbf16>
    %c0_16 = arith.constant 0 : index
    %c0_17 = arith.constant 0 : index
    %9 = vector.load %arg9[%c0_16, %c0_17] : memref<1x128xf32, #tpu.memory_space<vmem>>, vector<1x128xf32>
    %c0_18 = arith.constant 0 : index
    %c0_19 = arith.constant 0 : index
    %10 = vector.load %arg10[%c0_18, %c0_19] : memref<128x128xbf16, #tpu.memory_space<vmem>>, vector<128x128xbf16>
    %c0_20 = arith.constant 0 : index
    %c0_21 = arith.constant 0 : index
    %11 = vector.load %arg11[%c0_20, %c0_21] : memref<1x128xf32, #tpu.memory_space<vmem>>, vector<1x128xf32>
    %c0_22 = arith.constant 0 : index
    %c0_23 = arith.constant 0 : index
    %12 = vector.load %arg12[%c0_22, %c0_23] : memref<1x128xf32, #tpu.memory_space<vmem>>, vector<1x128xf32>
    %c0_24 = arith.constant 0 : index
    %c0_25 = arith.constant 0 : index
    %13 = vector.load %arg13[%c0_24, %c0_25] : memref<1x128xf32, #tpu.memory_space<vmem>>, vector<1x128xf32>
    %c0_26 = arith.constant 0 : index
    %c0_27 = arith.constant 0 : index
    %14 = vector.load %arg14[%c0_26, %c0_27] : memref<128x256xbf16, #tpu.memory_space<vmem>>, vector<128x256xbf16>
    %c0_28 = arith.constant 0 : index
    %c0_29 = arith.constant 0 : index
    %15 = vector.load %arg15[%c0_28, %c0_29] : memref<1x256xf32, #tpu.memory_space<vmem>>, vector<1x256xf32>
    %c0_30 = arith.constant 0 : index
    %c0_31 = arith.constant 0 : index
    %16 = vector.load %arg16[%c0_30, %c0_31] : memref<256x128xbf16, #tpu.memory_space<vmem>>, vector<256x128xbf16>
    %c0_32 = arith.constant 0 : index
    %c0_33 = arith.constant 0 : index
    %17 = vector.load %arg17[%c0_32, %c0_33] : memref<1x128xf32, #tpu.memory_space<vmem>>, vector<1x128xf32>
    %cst = arith.constant dense<0.000000e+00> : vector<8xf32>
    %18 = vector.multi_reduction <add>, %1, %cst [1] : vector<8x128xf32> to vector<8xf32>
    %19 = vector.shape_cast %18 : vector<8xf32> to vector<8x1xf32>
    %cst_34 = arith.constant 1.280000e+02 : f32
    %20 = vector.broadcast %cst_34 : f32 to vector<8x1xf32>
    %21 = arith.divf %19, %20 : vector<8x1xf32>
    %22 = vector.broadcast %21 : vector<8x1xf32> to vector<8x128xf32>
    %23 = arith.subf %1, %22 : vector<8x128xf32>
    %24 = arith.mulf %23, %23 : vector<8x128xf32>
    %cst_35 = arith.constant dense<0.000000e+00> : vector<8xf32>
    %25 = vector.multi_reduction <add>, %24, %cst_35 [1] : vector<8x128xf32> to vector<8xf32>
    %26 = vector.shape_cast %25 : vector<8xf32> to vector<8x1xf32>
    %cst_36 = arith.constant 1.280000e+02 : f32
    %27 = vector.broadcast %cst_36 : f32 to vector<8x1xf32>
    %28 = arith.divf %26, %27 : vector<8x1xf32>
    %cst_37 = arith.constant 9.99999996E-13 : f32
    %29 = vector.broadcast %cst_37 : f32 to vector<8x1xf32>
    %30 = arith.addf %28, %29 : vector<8x1xf32>
    %31 = math.rsqrt %30 : vector<8x1xf32>
    %32 = vector.broadcast %31 : vector<8x1xf32> to vector<8x128xf32>
    %33 = arith.mulf %23, %32 : vector<8x128xf32>
    %34 = vector.broadcast %2 : vector<1x128xf32> to vector<8x128xf32>
    %35 = arith.mulf %33, %34 : vector<8x128xf32>
    %36 = vector.broadcast %3 : vector<1x128xf32> to vector<8x128xf32>
    %37 = arith.addf %35, %36 : vector<8x128xf32>
    %38 = arith.truncf %37 : vector<8x128xf32> to vector<8x128xbf16>
    %cst_38 = arith.constant dense<0.000000e+00> : vector<8x128xf32>
    %39 = tpu.matmul %38, %4, %cst_38 {dimension_numbers = #tpu.dot_dimension_numbers<[1], [0], [0], [1], [0, 0, 1, 1], [], []>} : vector<8x128xbf16>, vector<128x128xbf16>, vector<8x128xf32> -> vector<8x128xf32>
    %40 = vector.broadcast %5 : vector<1x128xf32> to vector<8x128xf32>
    %41 = arith.addf %39, %40 : vector<8x128xf32>
    %cst_39 = arith.constant dense<0.000000e+00> : vector<8x128xf32>
    %42 = tpu.matmul %38, %6, %cst_39 {dimension_numbers = #tpu.dot_dimension_numbers<[1], [0], [0], [1], [0, 0, 1, 1], [], []>} : vector<8x128xbf16>, vector<128x128xbf16>, vector<8x128xf32> -> vector<8x128xf32>
    %43 = vector.broadcast %7 : vector<1x128xf32> to vector<8x128xf32>
    %44 = arith.addf %42, %43 : vector<8x128xf32>
    %cst_40 = arith.constant dense<0.000000e+00> : vector<8x128xf32>
    %45 = tpu.matmul %38, %8, %cst_40 {dimension_numbers = #tpu.dot_dimension_numbers<[1], [0], [0], [1], [0, 0, 1, 1], [], []>} : vector<8x128xbf16>, vector<128x128xbf16>, vector<8x128xf32> -> vector<8x128xf32>
    %46 = vector.broadcast %9 : vector<1x128xf32> to vector<8x128xf32>
    %47 = arith.addf %45, %46 : vector<8x128xf32>
    %48 = vector.shape_cast %41 : vector<8x128xf32> to vector<8x4x32xf32>
    %49 = tpu.transpose %48, [1, 0, 2] : vector<8x4x32xf32> -> vector<4x8x32xf32>
    %50 = arith.truncf %49 : vector<4x8x32xf32> to vector<4x8x32xbf16>
    %51 = vector.shape_cast %44 : vector<8x128xf32> to vector<8x4x32xf32>
    %52 = tpu.transpose %51, [1, 0, 2] : vector<8x4x32xf32> -> vector<4x8x32xf32>
    %53 = arith.truncf %52 : vector<4x8x32xf32> to vector<4x8x32xbf16>
    %54 = vector.shape_cast %47 : vector<8x128xf32> to vector<8x4x32xf32>
    %55 = tpu.transpose %54, [1, 0, 2] : vector<8x4x32xf32> -> vector<4x8x32xf32>
    %56 = arith.truncf %55 : vector<4x8x32xf32> to vector<4x8x32xbf16>
    "tpu.trace_start"() <{level = 10 : i32, message = "hqd,hkd->hqk"}> : () -> ()
    %cst_41 = arith.constant dense<0.000000e+00> : vector<4x8x8xf32>
    %57 = tpu.matmul %50, %53, %cst_41 {dimension_numbers = #tpu.dot_dimension_numbers<[2], [2], [1], [1], [0, 0, 0, 1, 1, 1], [0], [0]>} : vector<4x8x32xbf16>, vector<4x8x32xbf16>, vector<4x8x8xf32> -> vector<4x8x8xf32>
    "tpu.trace_stop"() : () -> ()
    %cst_42 = arith.constant 0.176776692 : f32
    %58 = vector.broadcast %cst_42 : f32 to vector<4x8x8xf32>
    %59 = arith.mulf %57, %58 : vector<4x8x8xf32>
    %cst_43 = arith.constant dense<0xFF800000> : vector<4x8xf32>
    %60 = vector.multi_reduction <maximumf>, %59, %cst_43 [2] : vector<4x8x8xf32> to vector<4x8xf32>
    %61 = vector.shape_cast %60 : vector<4x8xf32> to vector<4x8x1xf32>
    %62 = vector.broadcast %61 : vector<4x8x1xf32> to vector<4x8x8xf32>
    %63 = arith.subf %59, %62 : vector<4x8x8xf32>
    %64 = math.exp %63 : vector<4x8x8xf32>
    %cst_44 = arith.constant dense<0.000000e+00> : vector<4x8xf32>
    %65 = vector.multi_reduction <add>, %64, %cst_44 [2] : vector<4x8x8xf32> to vector<4x8xf32>
    %66 = vector.shape_cast %65 : vector<4x8xf32> to vector<4x8x1xf32>
    %67 = tpu.reciprocal %66 {approx = true} : vector<4x8x1xf32> -> vector<4x8x1xf32>
    %68 = vector.broadcast %67 : vector<4x8x1xf32> to vector<4x8x8xf32>
    %69 = arith.mulf %64, %68 : vector<4x8x8xf32>
    %70 = arith.truncf %69 : vector<4x8x8xf32> to vector<4x8x8xbf16>
    "tpu.trace_start"() <{level = 10 : i32, message = "hqk,hkd->hqd"}> : () -> ()
    %cst_45 = arith.constant dense<0.000000e+00> : vector<4x8x32xf32>
    %71 = tpu.matmul %70, %56, %cst_45 {dimension_numbers = #tpu.dot_dimension_numbers<[2], [1], [1], [2], [0, 0, 0, 1, 1, 2], [0], [0]>} : vector<4x8x8xbf16>, vector<4x8x32xbf16>, vector<4x8x32xf32> -> vector<4x8x32xf32>
    "tpu.trace_stop"() : () -> ()
    %72 = tpu.transpose %71, [1, 0, 2] : vector<4x8x32xf32> -> vector<8x4x32xf32>
    %73 = vector.shape_cast %72 : vector<8x4x32xf32> to vector<8x128xf32>
    %74 = arith.truncf %73 : vector<8x128xf32> to vector<8x128xbf16>
    %cst_46 = arith.constant dense<0.000000e+00> : vector<8x128xf32>
    %75 = tpu.matmul %74, %10, %cst_46 {dimension_numbers = #tpu.dot_dimension_numbers<[1], [0], [0], [1], [0, 0, 1, 1], [], []>} : vector<8x128xbf16>, vector<128x128xbf16>, vector<8x128xf32> -> vector<8x128xf32>
    %76 = vector.broadcast %11 : vector<1x128xf32> to vector<8x128xf32>
    %77 = arith.addf %75, %76 : vector<8x128xf32>
    %78 = arith.addf %77, %1 : vector<8x128xf32>
    %cst_47 = arith.constant dense<0.000000e+00> : vector<8xf32>
    %79 = vector.multi_reduction <add>, %78, %cst_47 [1] : vector<8x128xf32> to vector<8xf32>
    %80 = vector.shape_cast %79 : vector<8xf32> to vector<8x1xf32>
    %cst_48 = arith.constant 1.280000e+02 : f32
    %81 = vector.broadcast %cst_48 : f32 to vector<8x1xf32>
    %82 = arith.divf %80, %81 : vector<8x1xf32>
    %83 = vector.broadcast %82 : vector<8x1xf32> to vector<8x128xf32>
    %84 = arith.subf %78, %83 : vector<8x128xf32>
    %85 = arith.mulf %84, %84 : vector<8x128xf32>
    %cst_49 = arith.constant dense<0.000000e+00> : vector<8xf32>
    %86 = vector.multi_reduction <add>, %85, %cst_49 [1] : vector<8x128xf32> to vector<8xf32>
    %87 = vector.shape_cast %86 : vector<8xf32> to vector<8x1xf32>
    %cst_50 = arith.constant 1.280000e+02 : f32
    %88 = vector.broadcast %cst_50 : f32 to vector<8x1xf32>
    %89 = arith.divf %87, %88 : vector<8x1xf32>
    %cst_51 = arith.constant 9.99999996E-13 : f32
    %90 = vector.broadcast %cst_51 : f32 to vector<8x1xf32>
    %91 = arith.addf %89, %90 : vector<8x1xf32>
    %92 = math.rsqrt %91 : vector<8x1xf32>
    %93 = vector.broadcast %92 : vector<8x1xf32> to vector<8x128xf32>
    %94 = arith.mulf %84, %93 : vector<8x128xf32>
    %95 = vector.broadcast %12 : vector<1x128xf32> to vector<8x128xf32>
    %96 = arith.mulf %94, %95 : vector<8x128xf32>
    %97 = vector.broadcast %13 : vector<1x128xf32> to vector<8x128xf32>
    %98 = arith.addf %96, %97 : vector<8x128xf32>
    %99 = arith.truncf %98 : vector<8x128xf32> to vector<8x128xbf16>
    %cst_52 = arith.constant dense<0.000000e+00> : vector<8x256xf32>
    %100 = tpu.matmul %99, %14, %cst_52 {dimension_numbers = #tpu.dot_dimension_numbers<[1], [0], [0], [1], [0, 0, 1, 1], [], []>} : vector<8x128xbf16>, vector<128x256xbf16>, vector<8x256xf32> -> vector<8x256xf32>
    %101 = vector.broadcast %15 : vector<1x256xf32> to vector<8x256xf32>
    %102 = arith.addf %100, %101 : vector<8x256xf32>
    %103 = arith.mulf %102, %102 : vector<8x256xf32>
    %104 = arith.mulf %102, %103 : vector<8x256xf32>
    %cst_53 = arith.constant 4.471500e-02 : f32
    %105 = vector.broadcast %cst_53 : f32 to vector<8x256xf32>
    %106 = arith.mulf %105, %104 : vector<8x256xf32>
    %107 = arith.addf %102, %106 : vector<8x256xf32>
    %cst_54 = arith.constant 0.797884583 : f32
    %108 = vector.broadcast %cst_54 : f32 to vector<8x256xf32>
    %109 = arith.mulf %108, %107 : vector<8x256xf32>
    %110 = math.tanh %109 : vector<8x256xf32>
    %cst_55 = arith.constant 1.000000e+00 : f32
    %111 = vector.broadcast %cst_55 : f32 to vector<8x256xf32>
    %112 = arith.addf %111, %110 : vector<8x256xf32>
    %cst_56 = arith.constant 5.000000e-01 : f32
    %113 = vector.broadcast %cst_56 : f32 to vector<8x256xf32>
    %114 = arith.mulf %113, %112 : vector<8x256xf32>
    %115 = arith.mulf %102, %114 : vector<8x256xf32>
    %116 = arith.truncf %115 : vector<8x256xf32> to vector<8x256xbf16>
    %cst_57 = arith.constant dense<0.000000e+00> : vector<8x128xf32>
    %117 = tpu.matmul %116, %16, %cst_57 {dimension_numbers = #tpu.dot_dimension_numbers<[1], [0], [0], [1], [0, 0, 1, 1], [], []>} : vector<8x256xbf16>, vector<256x128xbf16>, vector<8x128xf32> -> vector<8x128xf32>
    %118 = vector.broadcast %17 : vector<1x128xf32> to vector<8x128xf32>
    %119 = arith.addf %117, %118 : vector<8x128xf32>
    %120 = arith.addf %119, %78 : vector<8x128xf32>
    %c0_58 = arith.constant 0 : index
    %c0_59 = arith.constant 0 : index
    %c0_60 = arith.constant 0 : index
    %121 = vector.load %arg18[%c0_58, %c0_59, %c0_60] : memref<1x8x128xf32, #tpu.memory_space<vmem>>, vector<1x8x128xf32>
    %122 = vector.shape_cast %121 : vector<1x8x128xf32> to vector<8x128xf32>
    %123 = vector.shape_cast %120 : vector<8x128xf32> to vector<1x8x128xf32>
    tpu.vector_store %arg18[%c0_58, %c0_59, %c0_60], %123 {strides = array<i32>} : memref<1x8x128xf32, #tpu.memory_space<vmem>>, vector<1x8x128xf32>,
    return
  }
  func.func @transform_0(%arg0: i32) -> (i32, i32, i32) {
    %c0_i32 = arith.constant 0 : i32
    %c0_i32_0 = arith.constant 0 : i32
    %c0_i32_1 = arith.constant 0 : i32
    return %arg0, %c0_i32, %c0_i32_0 : i32, i32, i32
  }
  func.func @transform_1(%arg0: i32) -> (i32, i32) {
    %c0_i32 = arith.constant 0 : i32
    %c0_i32_0 = arith.constant 0 : i32
    %c0_i32_1 = arith.constant 0 : i32
    return %c0_i32, %c0_i32_0 : i32, i32
  }
  func.func @transform_2(%arg0: i32) -> (i32, i32) {
    %c0_i32 = arith.constant 0 : i32
    %c0_i32_0 = arith.constant 0 : i32
    %c0_i32_1 = arith.constant 0 : i32
    return %c0_i32, %c0_i32_0 : i32, i32
  }
  func.func @transform_3(%arg0: i32) -> (i32, i32) {
    %c0_i32 = arith.constant 0 : i32
    %c0_i32_0 = arith.constant 0 : i32
    %c0_i32_1 = arith.constant 0 : i32
    return %c0_i32, %c0_i32_0 : i32, i32
  }
  func.func @transform_4(%arg0: i32) -> (i32, i32) {
    %c0_i32 = arith.constant 0 : i32
    %c0_i32_0 = arith.constant 0 : i32
    %c0_i32_1 = arith.constant 0 : i32
    return %c0_i32, %c0_i32_0 : i32, i32
  }
  func.func @transform_5(%arg0: i32) -> (i32, i32) {
    %c0_i32 = arith.constant 0 : i32
    %c0_i32_0 = arith.constant 0 : i32
    %c0_i32_1 = arith.constant 0 : i32
    return %c0_i32, %c0_i32_0 : i32, i32
  }
  func.func @transform_6(%arg0: i32) -> (i32, i32) {
    %c0_i32 = arith.constant 0 : i32
    %c0_i32_0 = arith.constant 0 : i32
    %c0_i32_1 = arith.constant 0 : i32
    return %c0_i32, %c0_i32_0 : i32, i32
  }
  func.func @transform_7(%arg0: i32) -> (i32, i32) {
    %c0_i32 = arith.constant 0 : i32
    %c0_i32_0 = arith.constant 0 : i32
    %c0_i32_1 = arith.constant 0 : i32
    return %c0_i32, %c0_i32_0 : i32, i32
  }
  func.func @transform_8(%arg0: i32) -> (i32, i32) {
    %c0_i32 = arith.constant 0 : i32
    %c0_i32_0 = arith.constant 0 : i32
    %c0_i32_1 = arith.constant 0 : i32
    return %c0_i32, %c0_i32_0 : i32, i32
  }
  func.func @transform_9(%arg0: i32) -> (i32, i32) {
    %c0_i32 = arith.constant 0 : i32
    %c0_i32_0 = arith.constant 0 : i32
    %c0_i32_1 = arith.constant 0 : i32
    return %c0_i32, %c0_i32_0 : i32, i32
  }
  func.func @transform_10(%arg0: i32) -> (i32, i32) {
    %c0_i32 = arith.constant 0 : i32
    %c0_i32_0 = arith.constant 0 : i32
    %c0_i32_1 = arith.constant 0 : i32
    return %c0_i32, %c0_i32_0 : i32, i32
  }
  func.func @transform_11(%arg0: i32) -> (i32, i32) {
    %c0_i32 = arith.constant 0 : i32
    %c0_i32_0 = arith.constant 0 : i32
    %c0_i32_1 = arith.constant 0 : i32
    return %c0_i32, %c0_i32_0 : i32, i32
  }
  func.func @transform_12(%arg0: i32) -> (i32, i32) {
    %c0_i32 = arith.constant 0 : i32
    %c0_i32_0 = arith.constant 0 : i32
    %c0_i32_1 = arith.constant 0 : i32
    return %c0_i32, %c0_i32_0 : i32, i32
  }
  func.func @transform_13(%arg0: i32) -> (i32, i32) {
    %c0_i32 = arith.constant 0 : i32
    %c0_i32_0 = arith.constant 0 : i32
    %c0_i32_1 = arith.constant 0 : i32
    return %c0_i32, %c0_i32_0 : i32, i32
  }
  func.func @transform_14(%arg0: i32) -> (i32, i32) {
    %c0_i32 = arith.constant 0 : i32
    %c0_i32_0 = arith.constant 0 : i32
    %c0_i32_1 = arith.constant 0 : i32
    return %c0_i32, %c0_i32_0 : i32, i32
  }
  func.func @transform_15(%arg0: i32) -> (i32, i32) {
    %c0_i32 = arith.constant 0 : i32
    %c0_i32_0 = arith.constant 0 : i32
    %c0_i32_1 = arith.constant 0 : i32
    return %c0_i32, %c0_i32_0 : i32, i32
  }
  func.func @transform_16(%arg0: i32) -> (i32, i32) {
    %c0_i32 = arith.constant 0 : i32
    %c0_i32_0 = arith.constant 0 : i32
    %c0_i32_1 = arith.constant 0 : i32
    return %c0_i32, %c0_i32_0 : i32, i32
  }
  func.func @transform_17(%arg0: i32) -> (i32, i32, i32) {
    %c0_i32 = arith.constant 0 : i32
    %c0_i32_0 = arith.constant 0 : i32
    %c0_i32_1 = arith.constant 0 : i32
    return %arg0, %c0_i32, %c0_i32_0 : i32, i32, i32
  }
}

</mosaic_0001>

<llo_original>
// kernel: fwd.2
$region0: #{fwd.2}
  #allocation0 [shape = 'u32[]', space=smem, size = 0x4, offset = 0x4, fixed_abs, tag = 'smem constant byte address 0x4 - core index']
  #allocation1 [shape = 'u32[144,128]{1,0:T(1,128)}', space=vmem, size = 0x12000, scoped, tag = 'internal scratch']
  %s0 = inlined_call_operand.hbm [shape: f32[2,8,128], index: 0, kind: input, shape index: {}, may-alias: {0,17}]
  %s1 = inlined_call_operand.hbm [shape: f32[1,128], index: 1, kind: input, shape index: {}, may-alias: {1,11}]
  %s2 = inlined_call_operand.hbm [shape: f32[1,128], index: 2, kind: input, shape index: {}, may-alias: {2,12}]
  %s3 = inlined_call_operand.hbm [shape: bf16[128,128], index: 3, kind: input, shape index: {}]
  %s4 = inlined_call_operand.hbm [shape: f32[1,128], index: 4, kind: input, shape index: {}]
  %s5 = inlined_call_operand.hbm [shape: bf16[128,128], index: 5, kind: input, shape index: {}]
  %s6 = inlined_call_operand.hbm [shape: f32[1,128], index: 6, kind: input, shape index: {}]
  %s7 = inlined_call_operand.hbm [shape: bf16[128,128], index: 7, kind: input, shape index: {}]
  %s8 = inlined_call_operand.hbm [shape: f32[1,128], index: 8, kind: input, shape index: {}]
  %s9 = inlined_call_operand.hbm [shape: bf16[128,128], index: 9, kind: input, shape index: {}]
  %s10 = inlined_call_operand.hbm [shape: f32[1,128], index: 10, kind: input, shape index: {}]
  %s11 = inlined_call_operand.hbm [shape: f32[1,128], index: 11, kind: input, shape index: {}, may-alias: {1,11}]
  %s12 = inlined_call_operand.hbm [shape: f32[1,128], index: 12, kind: input, shape index: {}, may-alias: {2,12}]
  %s13 = inlined_call_operand.hbm [shape: bf16[128,256], index: 13, kind: input, shape index: {}]
  %s14 = inlined_call_operand.hbm [shape: f32[1,256], index: 14, kind: input, shape index: {}]
  %s15 = inlined_call_operand.hbm [shape: bf16[256,128], index: 15, kind: input, shape index: {}]
  %s16 = inlined_call_operand.hbm [shape: f32[1,128], index: 16, kind: input, shape index: {}]
  %s17 = inlined_call_operand.hbm [shape: f32[2,8,128], index: 17, kind: output, shape index: {}, may-alias: {0,17}]
  %s18 = sld [smem:[#allocation0]]
  $region169: #{fwd.2} parent=0
    _
  %s20 = ssub.s32 1, %s18
  %s21 = scalar_select 0, %s20, %s18
  $region1: #{fwd.2} parent=0
    #allocation2 [shape = 'u8[8192]{0}', space=vmem, size = 0x2000, scoped, tag = 'input window, operand 0']
    #allocation3 [shape = 's32[2]{0}', space=sflag, size = 0x8, scoped, tag = 'scoped memory for fwd.2']
    #allocation4 [shape = 's32[2]{0}', space=sflag, size = 0x8, scoped, tag = 'scoped memory for fwd.2']
    #allocation5 [shape = 'u8[512]{0}', space=vmem, size = 0x400, scoped, tag = 'input window, operand 1, single buffered']
    #allocation6 [shape = 's32[1]{0}', space=sflag, size = 0x4, scoped, tag = 'scoped memory for fwd.2']
    #allocation7 [shape = 'u8[512]{0}', space=vmem, size = 0x400, scoped, tag = 'input window, operand 2, single buffered']
    #allocation8 [shape = 'u8[32768]{0}', space=vmem, size = 0x8000, scoped, tag = 'input window, operand 3, single buffered']
    #allocation9 [shape = 's32[1]{0}', space=sflag, size = 0x4, scoped, tag = 'scoped memory for fwd.2']
    #allocation10 [shape = 'u8[512]{0}', space=vmem, size = 0x400, scoped, tag = 'input window, operand 4, single buffered']
    #allocation11 [shape = 'u8[32768]{0}', space=vmem, size = 0x8000, scoped, tag = 'input window, operand 5, single buffered']
    #allocation12 [shape = 's32[1]{0}', space=sflag, size = 0x4, scoped, tag = 'scoped memory for fwd.2']
    #allocation13 [shape = 'u8[512]{0}', space=vmem, size = 0x400, scoped, tag = 'input window, operand 6, single buffered']
    #allocation14 [shape = 'u8[32768]{0}', space=vmem, size = 0x8000, scoped, tag = 'input window, operand 7, single buffered']
    #allocation15 [shape = 's32[1]{0}', space=sflag, size = 0x4, scoped, tag = 'scoped memory for fwd.2']
    #allocation16 [shape = 'u8[512]{0}', space=vmem, size = 0x400, scoped, tag = 'input window, operand 8, single buffered']
    #allocation17 [shape = 'u8[32768]{0}', space=vmem, size = 0x8000, scoped, tag = 'input window, operand 9, single buffered']
    #allocation18 [shape = 's32[1]{0}', space=sflag, size = 0x4, scoped, tag = 'scoped memory for fwd.2']
    #allocation19 [shape = 'u8[512]{0}', space=vmem, size = 0x400, scoped, tag = 'input window, operand 10, single buffered']
    #allocation20 [shape = 'u8[512]{0}', space=vmem, size = 0x400, scoped, tag = 'input window, operand 11, single buffered']
    #allocation21 [shape = 's32[1]{0}', space=sflag, size = 0x4, scoped, tag = 'scoped memory for fwd.2']
    #allocation22 [shape = 'u8[512]{0}', space=vmem, size = 0x400, scoped, tag = 'input window, operand 12, single buffered']
    #allocation23 [shape = 'u8[65536]{0}', space=vmem, size = 0x10000, scoped, tag = 'input window, operand 13, single buffered']
    #allocation24 [shape = 's32[1]{0}', space=sflag, size = 0x4, scoped, tag = 'scoped memory for fwd.2']
    #allocation25 [shape = 'u8[1024]{0}', space=vmem, size = 0x400, scoped, tag = 'input window, operand 14, single buffered']
    #allocation26 [shape = 'u8[65536]{0}', space=vmem, size = 0x10000, scoped, tag = 'input window, operand 15, single buffered']
    #allocation27 [shape = 's32[1]{0}', space=sflag, size = 0x4, scoped, tag = 'scoped memory for fwd.2']
    #allocation28 [shape = 'u8[512]{0}', space=vmem, size = 0x400, scoped, tag = 'input window, operand 16, single buffered']
    #allocation29 [shape = 'u8[8192]{0}', space=vmem, size = 0x2000, scoped, tag = 'output window, operand 0']
    %22 = vsyncpa [#allocation3], 0
    %s23 = scalar_lea.sflag [#allocation3], 1
    %24 = vsyncpa %s23, 0
    %25 = vsyncpa [#allocation6], 0
    %26 = vsyncpa [#allocation9], 0
    %27 = vsyncpa [#allocation12], 0
    %28 = vsyncpa [#allocation15], 0
    %29 = vsyncpa [#allocation18], 0
    %30 = vsyncpa [#allocation21], 0
    %31 = vsyncpa [#allocation24], 0
    %32 = vsyncpa [#allocation27], 0
    %33 = vsyncpa [#allocation4], 0
    %s34 = scalar_lea.sflag [#allocation4], 1
    %35 = vsyncpa %s34, 0
    loop: start=0, step=1, limit=4
    $region2: #{fwd.2} parent=1 // loop_pre_header
      _
    $region3: #{fwd.2} parent=1 // loop_header
      %s37 = sphi 0, %s41
      %p38 = scmp.ge.s32.totalorder %s37, 4
      %s47 = sphi 0, %s49
      %s50 = sphi 0, %s47
      %s51 = sphi 0, %s50
      %s67 = sphi 0, %s51
      %s71 = sphi 0, %s71
      %s73 = sphi 0, %s71
      %s74 = sphi 0, %s73
      %s88 = sphi 0, %s74
      %s92 = sphi 0, %s92
      %s94 = sphi 0, %s92
      %s95 = sphi 0, %s94
      %s109 = sphi 0, %s95
      %s113 = sphi 0, %s113
      %s115 = sphi 0, %s113
      %s116 = sphi 0, %s115
      %s130 = sphi 0, %s116
      %s134 = sphi 0, %s134
      %s136 = sphi 0, %s134
      %s137 = sphi 0, %s136
      %s151 = sphi 0, %s137
      %s155 = sphi 0, %s155
      %s157 = sphi 0, %s155
      %s158 = sphi 0, %s157
      %s172 = sphi 0, %s158
      %s176 = sphi 0, %s176
      %s178 = sphi 0, %s176
      %s179 = sphi 0, %s178
      %s193 = sphi 0, %s179
      %s197 = sphi 0, %s197
      %s199 = sphi 0, %s197
      %s200 = sphi 0, %s199
      %s214 = sphi 0, %s200
      %s218 = sphi 0, %s218
      %s220 = sphi 0, %s218
      %s221 = sphi 0, %s220
      %s235 = sphi 0, %s221
      %s239 = sphi 0, %s239
      %s241 = sphi 0, %s239
      %s242 = sphi 0, %s241
      %s256 = sphi 0, %s242
      %s260 = sphi 0, %s260
      %s262 = sphi 0, %s260
      %s263 = sphi 0, %s262
      %s277 = sphi 0, %s263
      %s281 = sphi 0, %s281
      %s283 = sphi 0, %s281
      %s284 = sphi 0, %s283
      %s298 = sphi 0, %s284
      %s302 = sphi 0, %s302
      %s304 = sphi 0, %s302
      %s305 = sphi 0, %s304
      %s319 = sphi 0, %s305
      %s323 = sphi 0, %s323
      %s325 = sphi 0, %s323
      %s326 = sphi 0, %s325
      %s340 = sphi 0, %s326
      %s344 = sphi 0, %s344
      %s346 = sphi 0, %s344
      %s347 = sphi 0, %s346
      %s361 = sphi 0, %s347
      %s365 = sphi 0, %s365
      %s367 = sphi 0, %s365
      %s368 = sphi 0, %s367
      %s382 = sphi 0, %s368
      %s386 = sphi 0, %s386
      %s388 = sphi 0, %s386
      %s389 = sphi 0, %s388
      %s403 = sphi 0, %s389
      %s409 = sphi 0, %s411
      %s412 = sphi 0, %s409
      %s413 = sphi 0, %s412
      %s429 = sphi 0, %s413
    $region4: #{fwd.2} parent=1 // loop_header_branch
      %40 = sbr.rel (%p38) target = $region8
    $region5: #{fwd.2} parent=1 // loop_body
      %s42 = ssub.s32 %s37, 1
      %s43 = ssub.s32 %s37, 2
      %s44 = sadd.s32 %s37, 1
      %s45 = ssub.s32 %s37, %s44
      %p46 = scmp.eq.s32.totalorder %s45, 0
      %s48 = sadd.s32 %s47, 1
      %s49 = scalar_select %p46, %s47, %s48
      %p52 = pneg %p46
      %p53 = scmp.eq.s32.totalorder %s37, 1
      %p54 = por %p52, %p53
      %p55 = scmp.ne.s32.totalorder %s47, %s50
      %p56 = scmp.eq.s32.totalorder %s37, 0
      %p57 = por %p55, %p56
      %p58 = scmp.ne.s32.totalorder %s47, %s50
      %p59 = scmp.eq.s32.totalorder %s42, 1
      %p60 = por %p58, %p59
      %p61 = scmp.ne.s32.totalorder %s50, %s51
      %p62 = scmp.eq.s32.totalorder %s42, 0
      %p63 = por %p61, %p62
      %p64 = scmp.ne.s32.totalorder %s50, %s51
      %p65 = scmp.eq.s32.totalorder %s43, 1
      %p66 = por %p64, %p65
      %p68 = scmp.ne.s32.totalorder %s51, %s67
      %p69 = scmp.eq.s32.totalorder %s43, 0
      %p70 = por %p68, %p69
      %s72 = sadd.s32 %s71, 1
      %p75 = scmp.eq.s32.totalorder %s37, 1
      %p76 = scmp.ne.s32.totalorder %s71, %s73
      %p77 = scmp.eq.s32.totalorder %s37, 0
      %p78 = por %p76, %p77
      %p79 = scmp.ne.s32.totalorder %s71, %s73
      %p80 = scmp.eq.s32.totalorder %s42, 1
      %p81 = por %p79, %p80
      %p82 = scmp.ne.s32.totalorder %s73, %s74
      %p83 = scmp.eq.s32.totalorder %s42, 0
      %p84 = por %p82, %p83
      %p85 = scmp.ne.s32.totalorder %s73, %s74
      %p86 = scmp.eq.s32.totalorder %s43, 1
      %p87 = por %p85, %p86
      %p89 = scmp.ne.s32.totalorder %s74, %s88
      %p90 = scmp.eq.s32.totalorder %s43, 0
      %p91 = por %p89, %p90
      %s93 = sadd.s32 %s92, 1
      %p96 = scmp.eq.s32.totalorder %s37, 1
      %p97 = scmp.ne.s32.totalorder %s92, %s94
      %p98 = scmp.eq.s32.totalorder %s37, 0
      %p99 = por %p97, %p98
      %p100 = scmp.ne.s32.totalorder %s92, %s94
      %p101 = scmp.eq.s32.totalorder %s42, 1
      %p102 = por %p100, %p101
      %p103 = scmp.ne.s32.totalorder %s94, %s95
      %p104 = scmp.eq.s32.totalorder %s42, 0
      %p105 = por %p103, %p104
      %p106 = scmp.ne.s32.totalorder %s94, %s95
      %p107 = scmp.eq.s32.totalorder %s43, 1
      %p108 = por %p106, %p107
      %p110 = scmp.ne.s32.totalorder %s95, %s109
      %p111 = scmp.eq.s32.totalorder %s43, 0
      %p112 = por %p110, %p111
      %s114 = sadd.s32 %s113, 1
      %p117 = scmp.eq.s32.totalorder %s37, 1
      %p118 = scmp.ne.s32.totalorder %s113, %s115
      %p119 = scmp.eq.s32.totalorder %s37, 0
      %p120 = por %p118, %p119
      %p121 = scmp.ne.s32.totalorder %s113, %s115
      %p122 = scmp.eq.s32.totalorder %s42, 1
      %p123 = por %p121, %p122
      %p124 = scmp.ne.s32.totalorder %s115, %s116
      %p125 = scmp.eq.s32.totalorder %s42, 0
      %p126 = por %p124, %p125
      %p127 = scmp.ne.s32.totalorder %s115, %s116
      %p128 = scmp.eq.s32.totalorder %s43, 1
      %p129 = por %p127, %p128
      %p131 = scmp.ne.s32.totalorder %s116, %s130
      %p132 = scmp.eq.s32.totalorder %s43, 0
      %p133 = por %p131, %p132
      %s135 = sadd.s32 %s134, 1
      %p138 = scmp.eq.s32.totalorder %s37, 1
      %p139 = scmp.ne.s32.totalorder %s134, %s136
      %p140 = scmp.eq.s32.totalorder %s37, 0
      %p141 = por %p139, %p140
      %p142 = scmp.ne.s32.totalorder %s134, %s136
      %p143 = scmp.eq.s32.totalorder %s42, 1
      %p144 = por %p142, %p143
      %p145 = scmp.ne.s32.totalorder %s136, %s137
      %p146 = scmp.eq.s32.totalorder %s42, 0
      %p147 = por %p145, %p146
      %p148 = scmp.ne.s32.totalorder %s136, %s137
      %p149 = scmp.eq.s32.totalorder %s43, 1
      %p150 = por %p148, %p149
      %p152 = scmp.ne.s32.totalorder %s137, %s151
      %p153 = scmp.eq.s32.totalorder %s43, 0
      %p154 = por %p152, %p153
      %s156 = sadd.s32 %s155, 1
      %p159 = scmp.eq.s32.totalorder %s37, 1
      %p160 = scmp.ne.s32.totalorder %s155, %s157
      %p161 = scmp.eq.s32.totalorder %s37, 0
      %p162 = por %p160, %p161
      %p163 = scmp.ne.s32.totalorder %s155, %s157
      %p164 = scmp.eq.s32.totalorder %s42, 1
      %p165 = por %p163, %p164
      %p166 = scmp.ne.s32.totalorder %s157, %s158
      %p167 = scmp.eq.s32.totalorder %s42, 0
      %p168 = por %p166, %p167
      %p169 = scmp.ne.s32.totalorder %s157, %s158
      %p170 = scmp.eq.s32.totalorder %s43, 1
      %p171 = por %p169, %p170
      %p173 = scmp.ne.s32.totalorder %s158, %s172
      %p174 = scmp.eq.s32.totalorder %s43, 0
      %p175 = por %p173, %p174
      %s177 = sadd.s32 %s176, 1
      %p180 = scmp.eq.s32.totalorder %s37, 1
      %p181 = scmp.ne.s32.totalorder %s176, %s178
      %p182 = scmp.eq.s32.totalorder %s37, 0
      %p183 = por %p181, %p182
      %p184 = scmp.ne.s32.totalorder %s176, %s178
      %p185 = scmp.eq.s32.totalorder %s42, 1
      %p186 = por %p184, %p185
      %p187 = scmp.ne.s32.totalorder %s178, %s179
      %p188 = scmp.eq.s32.totalorder %s42, 0
      %p189 = por %p187, %p188
      %p190 = scmp.ne.s32.totalorder %s178, %s179
      %p191 = scmp.eq.s32.totalorder %s43, 1
      %p192 = por %p190, %p191
      %p194 = scmp.ne.s32.totalorder %s179, %s193
      %p195 = scmp.eq.s32.totalorder %s43, 0
      %p196 = por %p194, %p195
      %s198 = sadd.s32 %s197, 1
      %p201 = scmp.eq.s32.totalorder %s37, 1
      %p202 = scmp.ne.s32.totalorder %s197, %s199
      %p203 = scmp.eq.s32.totalorder %s37, 0
      %p204 = por %p202, %p203
      %p205 = scmp.ne.s32.totalorder %s197, %s199
      %p206 = scmp.eq.s32.totalorder %s42, 1
      %p207 = por %p205, %p206
      %p208 = scmp.ne.s32.totalorder %s199, %s200
      %p209 = scmp.eq.s32.totalorder %s42, 0
      %p210 = por %p208, %p209
      %p211 = scmp.ne.s32.totalorder %s199, %s200
      %p212 = scmp.eq.s32.totalorder %s43, 1
      %p213 = por %p211, %p212
      %p215 = scmp.ne.s32.totalorder %s200, %s214
      %p216 = scmp.eq.s32.totalorder %s43, 0
      %p217 = por %p215, %p216
      %s219 = sadd.s32 %s218, 1
      %p222 = scmp.eq.s32.totalorder %s37, 1
      %p223 = scmp.ne.s32.totalorder %s218, %s220
      %p224 = scmp.eq.s32.totalorder %s37, 0
      %p225 = por %p223, %p224
      %p226 = scmp.ne.s32.totalorder %s218, %s220
      %p227 = scmp.eq.s32.totalorder %s42, 1
      %p228 = por %p226, %p227
      %p229 = scmp.ne.s32.totalorder %s220, %s221
      %p230 = scmp.eq.s32.totalorder %s42, 0
      %p231 = por %p229, %p230
      %p232 = scmp.ne.s32.totalorder %s220, %s221
      %p233 = scmp.eq.s32.totalorder %s43, 1
      %p234 = por %p232, %p233
      %p236 = scmp.ne.s32.totalorder %s221, %s235
      %p237 = scmp.eq.s32.totalorder %s43, 0
      %p238 = por %p236, %p237
      %s240 = sadd.s32 %s239, 1
      %p243 = scmp.eq.s32.totalorder %s37, 1
      %p244 = scmp.ne.s32.totalorder %s239, %s241
      %p245 = scmp.eq.s32.totalorder %s37, 0
      %p246 = por %p244, %p245
      %p247 = scmp.ne.s32.totalorder %s239, %s241
      %p248 = scmp.eq.s32.totalorder %s42, 1
      %p249 = por %p247, %p248
      %p250 = scmp.ne.s32.totalorder %s241, %s242
      %p251 = scmp.eq.s32.totalorder %s42, 0
      %p252 = por %p250, %p251
      %p253 = scmp.ne.s32.totalorder %s241, %s242
      %p254 = scmp.eq.s32.totalorder %s43, 1
      %p255 = por %p253, %p254
      %p257 = scmp.ne.s32.totalorder %s242, %s256
      %p258 = scmp.eq.s32.totalorder %s43, 0
      %p259 = por %p257, %p258
      %s261 = sadd.s32 %s260, 1
      %p264 = scmp.eq.s32.totalorder %s37, 1
      %p265 = scmp.ne.s32.totalorder %s260, %s262
      %p266 = scmp.eq.s32.totalorder %s37, 0
      %p267 = por %p265, %p266
      %p268 = scmp.ne.s32.totalorder %s260, %s262
      %p269 = scmp.eq.s32.totalorder %s42, 1
      %p270 = por %p268, %p269
      %p271 = scmp.ne.s32.totalorder %s262, %s263
      %p272 = scmp.eq.s32.totalorder %s42, 0
      %p273 = por %p271, %p272
      %p274 = scmp.ne.s32.totalorder %s262, %s263
      %p275 = scmp.eq.s32.totalorder %s43, 1
      %p276 = por %p274, %p275
      %p278 = scmp.ne.s32.totalorder %s263, %s277
      %p279 = scmp.eq.s32.totalorder %s43, 0
      %p280 = por %p278, %p279
      %s282 = sadd.s32 %s281, 1
      %p285 = scmp.eq.s32.totalorder %s37, 1
      %p286 = scmp.ne.s32.totalorder %s281, %s283
      %p287 = scmp.eq.s32.totalorder %s37, 0
      %p288 = por %p286, %p287
      %p289 = scmp.ne.s32.totalorder %s281, %s283
      %p290 = scmp.eq.s32.totalorder %s42, 1
      %p291 = por %p289, %p290
      %p292 = scmp.ne.s32.totalorder %s283, %s284
      %p293 = scmp.eq.s32.totalorder %s42, 0
      %p294 = por %p292, %p293
      %p295 = scmp.ne.s32.totalorder %s283, %s284
      %p296 = scmp.eq.s32.totalorder %s43, 1
      %p297 = por %p295, %p296
      %p299 = scmp.ne.s32.totalorder %s284, %s298
      %p300 = scmp.eq.s32.totalorder %s43, 0
      %p301 = por %p299, %p300
      %s303 = sadd.s32 %s302, 1
      %p306 = scmp.eq.s32.totalorder %s37, 1
      %p307 = scmp.ne.s32.totalorder %s302, %s304
      %p308 = scmp.eq.s32.totalorder %s37, 0
      %p309 = por %p307, %p308
      %p310 = scmp.ne.s32.totalorder %s302, %s304
      %p311 = scmp.eq.s32.totalorder %s42, 1
      %p312 = por %p310, %p311
      %p313 = scmp.ne.s32.totalorder %s304, %s305
      %p314 = scmp.eq.s32.totalorder %s42, 0
      %p315 = por %p313, %p314
      %p316 = scmp.ne.s32.totalorder %s304, %s305
      %p317 = scmp.eq.s32.totalorder %s43, 1
      %p318 = por %p316, %p317
      %p320 = scmp.ne.s32.totalorder %s305, %s319
      %p321 = scmp.eq.s32.totalorder %s43, 0
      %p322 = por %p320, %p321
      %s324 = sadd.s32 %s323, 1
      %p327 = scmp.eq.s32.totalorder %s37, 1
      %p328 = scmp.ne.s32.totalorder %s323, %s325
      %p329 = scmp.eq.s32.totalorder %s37, 0
      %p330 = por %p328, %p329
      %p331 = scmp.ne.s32.totalorder %s323, %s325
      %p332 = scmp.eq.s32.totalorder %s42, 1
      %p333 = por %p331, %p332
      %p334 = scmp.ne.s32.totalorder %s325, %s326
      %p335 = scmp.eq.s32.totalorder %s42, 0
      %p336 = por %p334, %p335
      %p337 = scmp.ne.s32.totalorder %s325, %s326
      %p338 = scmp.eq.s32.totalorder %s43, 1
      %p339 = por %p337, %p338
      %p341 = scmp.ne.s32.totalorder %s326, %s340
      %p342 = scmp.eq.s32.totalorder %s43, 0
      %p343 = por %p341, %p342
      %s345 = sadd.s32 %s344, 1
      %p348 = scmp.eq.s32.totalorder %s37, 1
      %p349 = scmp.ne.s32.totalorder %s344, %s346
      %p350 = scmp.eq.s32.totalorder %s37, 0
      %p351 = por %p349, %p350
      %p352 = scmp.ne.s32.totalorder %s344, %s346
      %p353 = scmp.eq.s32.totalorder %s42, 1
      %p354 = por %p352, %p353
      %p355 = scmp.ne.s32.totalorder %s346, %s347
      %p356 = scmp.eq.s32.totalorder %s42, 0
      %p357 = por %p355, %p356
      %p358 = scmp.ne.s32.totalorder %s346, %s347
      %p359 = scmp.eq.s32.totalorder %s43, 1
      %p360 = por %p358, %p359
      %p362 = scmp.ne.s32.totalorder %s347, %s361
      %p363 = scmp.eq.s32.totalorder %s43, 0
      %p364 = por %p362, %p363
      %s366 = sadd.s32 %s365, 1
      %p369 = scmp.eq.s32.totalorder %s37, 1
      %p370 = scmp.ne.s32.totalorder %s365, %s367
      %p371 = scmp.eq.s32.totalorder %s37, 0
      %p372 = por %p370, %p371
      %p373 = scmp.ne.s32.totalorder %s365, %s367
      %p374 = scmp.eq.s32.totalorder %s42, 1
      %p375 = por %p373, %p374
      %p376 = scmp.ne.s32.totalorder %s367, %s368
      %p377 = scmp.eq.s32.totalorder %s42, 0
      %p378 = por %p376, %p377
      %p379 = scmp.ne.s32.totalorder %s367, %s368
      %p380 = scmp.eq.s32.totalorder %s43, 1
      %p381 = por %p379, %p380
      %p383 = scmp.ne.s32.totalorder %s368, %s382
      %p384 = scmp.eq.s32.totalorder %s43, 0
      %p385 = por %p383, %p384
      %s387 = sadd.s32 %s386, 1
      %p390 = scmp.eq.s32.totalorder %s37, 1
      %p391 = scmp.ne.s32.totalorder %s386, %s388
      %p392 = scmp.eq.s32.totalorder %s37, 0
      %p393 = por %p391, %p392
      %p394 = scmp.ne.s32.totalorder %s386, %s388
      %p395 = scmp.eq.s32.totalorder %s42, 1
      %p396 = por %p394, %p395
      %p397 = scmp.ne.s32.totalorder %s388, %s389
      %p398 = scmp.eq.s32.totalorder %s42, 0
      %p399 = por %p397, %p398
      %p400 = scmp.ne.s32.totalorder %s388, %s389
      %p401 = scmp.eq.s32.totalorder %s43, 1
      %p402 = por %p400, %p401
      %p404 = scmp.ne.s32.totalorder %s389, %s403
      %p405 = scmp.eq.s32.totalorder %s43, 0
      %p406 = por %p404, %p405
      %s407 = ssub.s32 %s37, %s44
      %p408 = scmp.eq.s32.totalorder %s407, 0
      %s410 = sadd.s32 %s409, 1
      %s411 = scalar_select %p408, %s409, %s410
      %p414 = pneg %p408
      %p415 = scmp.eq.s32.totalorder %s37, 1
      %p416 = por %p414, %p415
      %p417 = scmp.ne.s32.totalorder %s409, %s412
      %p418 = scmp.eq.s32.totalorder %s37, 0
      %p419 = por %p417, %p418
      %p420 = scmp.ne.s32.totalorder %s409, %s412
      %p421 = scmp.eq.s32.totalorder %s42, 1
      %p422 = por %p420, %p421
      %p423 = scmp.ne.s32.totalorder %s412, %s413
      %p424 = scmp.eq.s32.totalorder %s42, 0
      %p425 = por %p423, %p424
      %p426 = scmp.ne.s32.totalorder %s412, %s413
      %p427 = scmp.eq.s32.totalorder %s43, 1
      %p428 = por %p426, %p427
      %p430 = scmp.ne.s32.totalorder %s413, %s429
      %p431 = scmp.eq.s32.totalorder %s43, 0
      %p432 = por %p430, %p431
      %p433 = scmp.le.s32.totalorder 1, %s37
      %p434 = scmp.lt.s32.totalorder %s37, 3
      %p435 = pnand %p433, %p434
      %p436 = pneg %p435
      // Predicated region
      $region9: #{fwd.2} parent=5 // pred_check
        _
      $region10: #{fwd.2} parent=5 // pred_check_branch
        %438 = sbr.rel (%p435) target = $region12
      $region11: #{fwd.2} parent=5 // pred_region
        %s439 = ssub.s32 %s37, 1
        // Predicated region
        $region13: #{fwd.2} parent=11 // pred_check
          %p440 = pneg %p84
        $region14: #{fwd.2} parent=11 // pred_check_branch
          %442 = sbr.rel (%p440) target = $region16
        $region15: #{fwd.2} parent=11 // pred_region
          %s444 = ssub.s32 16, 16
          %445 = vsyncadd [#allocation6], %s444
          %s447 = sshll.u32 [#allocation5], 4
          %s448 = int_to_ptr.vmem [resolvable:$true] %s447
          %450 = dma.hbm_to_vmem [thread:$0]  %s1, 16, %s448, [#allocation6]
        $region16: #{fwd.2} parent=11 // pred_fallthru
          _
        // Predicated region
        $region17: #{fwd.2} parent=11 // pred_check
          %p451 = pneg %p105
        $region18: #{fwd.2} parent=11 // pred_check_branch
          %453 = sbr.rel (%p451) target = $region20
        $region19: #{fwd.2} parent=11 // pred_region
          %s455 = ssub.s32 16, 16
          %456 = vsyncadd [#allocation6], %s455
          %s458 = sshll.u32 [#allocation7], 4
          %s459 = int_to_ptr.vmem [resolvable:$true] %s458
          %461 = dma.hbm_to_vmem [thread:$0]  %s2, 16, %s459, [#allocation6]
        $region20: #{fwd.2} parent=11 // pred_fallthru
          _
        // Predicated region
        $region21: #{fwd.2} parent=11 // pred_check
          %p462 = pneg %p126
        $region22: #{fwd.2} parent=11 // pred_check_branch
          %464 = sbr.rel (%p462) target = $region24
        $region23: #{fwd.2} parent=11 // pred_region
          %s466 = ssub.s32 1024, 1024
          %467 = vsyncadd [#allocation9], %s466
          %s468 = sshll.u32 [#allocation8], 4
          %s469 = int_to_ptr.vmem [resolvable:$true] %s468
          %474 = dma.hbm_to_vmem [thread:$0]  %s3, 1024, %s469, [#allocation9], 64, 64, 4
        $region24: #{fwd.2} parent=11 // pred_fallthru
          _
        // Predicated region
        $region25: #{fwd.2} parent=11 // pred_check
          %p475 = pneg %p147
        $region26: #{fwd.2} parent=11 // pred_check_branch
          %477 = sbr.rel (%p475) target = $region28
        $region27: #{fwd.2} parent=11 // pred_region
          %s479 = ssub.s32 16, 16
          %480 = vsyncadd [#allocation9], %s479
          %s482 = sshll.u32 [#allocation10], 4
          %s483 = int_to_ptr.vmem [resolvable:$true] %s482
          %485 = dma.hbm_to_vmem [thread:$0]  %s4, 16, %s483, [#allocation9]
        $region28: #{fwd.2} parent=11 // pred_fallthru
          _
        // Predicated region
        $region29: #{fwd.2} parent=11 // pred_check
          %p486 = pneg %p168
        $region30: #{fwd.2} parent=11 // pred_check_branch
          %488 = sbr.rel (%p486) target = $region32
        $region31: #{fwd.2} parent=11 // pred_region
          %s490 = ssub.s32 1024, 1024
          %491 = vsyncadd [#allocation12], %s490
          %s492 = sshll.u32 [#allocation11], 4
          %s493 = int_to_ptr.vmem [resolvable:$true] %s492
          %498 = dma.hbm_to_vmem [thread:$0]  %s5, 1024, %s493, [#allocation12], 64, 64, 4
        $region32: #{fwd.2} parent=11 // pred_fallthru
          _
        // Predicated region
        $region33: #{fwd.2} parent=11 // pred_check
          %p499 = pneg %p189
        $region34: #{fwd.2} parent=11 // pred_check_branch
          %501 = sbr.rel (%p499) target = $region36
        $region35: #{fwd.2} parent=11 // pred_region
          %s503 = ssub.s32 16, 16
          %504 = vsyncadd [#allocation12], %s503
          %s506 = sshll.u32 [#allocation13], 4
          %s507 = int_to_ptr.vmem [resolvable:$true] %s506
          %509 = dma.hbm_to_vmem [thread:$0]  %s6, 16, %s507, [#allocation12]
        $region36: #{fwd.2} parent=11 // pred_fallthru
          _
        // Predicated region
        $region37: #{fwd.2} parent=11 // pred_check
          %p510 = pneg %p210
        $region38: #{fwd.2} parent=11 // pred_check_branch
          %512 = sbr.rel (%p510) target = $region40
        $region39: #{fwd.2} parent=11 // pred_region
          %s514 = ssub.s32 1024, 1024
          %515 = vsyncadd [#allocation15], %s514
          %s516 = sshll.u32 [#allocation14], 4
          %s517 = int_to_ptr.vmem [resolvable:$true] %s516
          %522 = dma.hbm_to_vmem [thread:$0]  %s7, 1024, %s517, [#allocation15], 64, 64, 4
        $region40: #{fwd.2} parent=11 // pred_fallthru
          _
        // Predicated region
        $region41: #{fwd.2} parent=11 // pred_check
          %p523 = pneg %p231
        $region42: #{fwd.2} parent=11 // pred_check_branch
          %525 = sbr.rel (%p523) target = $region44
        $region43: #{fwd.2} parent=11 // pred_region
          %s527 = ssub.s32 16, 16
          %528 = vsyncadd [#allocation15], %s527
          %s530 = sshll.u32 [#allocation16], 4
          %s531 = int_to_ptr.vmem [resolvable:$true] %s530
          %533 = dma.hbm_to_vmem [thread:$0]  %s8, 16, %s531, [#allocation15]
        $region44: #{fwd.2} parent=11 // pred_fallthru
          _
        // Predicated region
        $region45: #{fwd.2} parent=11 // pred_check
          %p534 = pneg %p252
        $region46: #{fwd.2} parent=11 // pred_check_branch
          %536 = sbr.rel (%p534) target = $region48
        $region47: #{fwd.2} parent=11 // pred_region
          %s538 = ssub.s32 1024, 1024
          %539 = vsyncadd [#allocation18], %s538
          %s540 = sshll.u32 [#allocation17], 4
          %s541 = int_to_ptr.vmem [resolvable:$true] %s540
          %546 = dma.hbm_to_vmem [thread:$0]  %s9, 1024, %s541, [#allocation18], 64, 64, 4
        $region48: #{fwd.2} parent=11 // pred_fallthru
          _
        // Predicated region
        $region49: #{fwd.2} parent=11 // pred_check
          %p547 = pneg %p273
        $region50: #{fwd.2} parent=11 // pred_check_branch
          %549 = sbr.rel (%p547) target = $region52
        $region51: #{fwd.2} parent=11 // pred_region
          %s551 = ssub.s32 16, 16
          %552 = vsyncadd [#allocation18], %s551
          %s554 = sshll.u32 [#allocation19], 4
          %s555 = int_to_ptr.vmem [resolvable:$true] %s554
          %557 = dma.hbm_to_vmem [thread:$0]  %s10, 16, %s555, [#allocation18]
        $region52: #{fwd.2} parent=11 // pred_fallthru
          _
        // Predicated region
        $region53: #{fwd.2} parent=11 // pred_check
          %p558 = pneg %p294
        $region54: #{fwd.2} parent=11 // pred_check_branch
          %560 = sbr.rel (%p558) target = $region56
        $region55: #{fwd.2} parent=11 // pred_region
          %s562 = ssub.s32 16, 16
          %563 = vsyncadd [#allocation21], %s562
          %s565 = sshll.u32 [#allocation20], 4
          %s566 = int_to_ptr.vmem [resolvable:$true] %s565
          %568 = dma.hbm_to_vmem [thread:$0]  %s11, 16, %s566, [#allocation21]
        $region56: #{fwd.2} parent=11 // pred_fallthru
          _
        // Predicated region
        $region57: #{fwd.2} parent=11 // pred_check
          %p569 = pneg %p315
        $region58: #{fwd.2} parent=11 // pred_check_branch
          %571 = sbr.rel (%p569) target = $region60
        $region59: #{fwd.2} parent=11 // pred_region
          %s573 = ssub.s32 16, 16
          %574 = vsyncadd [#allocation21], %s573
          %s576 = sshll.u32 [#allocation22], 4
          %s577 = int_to_ptr.vmem [resolvable:$true] %s576
          %579 = dma.hbm_to_vmem [thread:$0]  %s12, 16, %s577, [#allocation21]
        $region60: #{fwd.2} parent=11 // pred_fallthru
          _
        // Predicated region
        $region61: #{fwd.2} parent=11 // pred_check
          %p580 = pneg %p336
        $region62: #{fwd.2} parent=11 // pred_check_branch
          %582 = sbr.rel (%p580) target = $region64
        $region63: #{fwd.2} parent=11 // pred_region
          %s584 = ssub.s32 2048, 2048
          %585 = vsyncadd [#allocation24], %s584
          %s586 = sshll.u32 [#allocation23], 4
          %s587 = int_to_ptr.vmem [resolvable:$true] %s586
          %592 = dma.hbm_to_vmem [thread:$0]  %s13, 2048, %s587, [#allocation24], 128, 128, 8
        $region64: #{fwd.2} parent=11 // pred_fallthru
          _
        // Predicated region
        $region65: #{fwd.2} parent=11 // pred_check
          %p593 = pneg %p357
        $region66: #{fwd.2} parent=11 // pred_check_branch
          %595 = sbr.rel (%p593) target = $region68
        $region67: #{fwd.2} parent=11 // pred_region
          %s597 = ssub.s32 32, 32
          %598 = vsyncadd [#allocation24], %s597
          %s600 = sshll.u32 [#allocation25], 4
          %s601 = int_to_ptr.vmem [resolvable:$true] %s600
          %603 = dma.hbm_to_vmem [thread:$0]  %s14, 32, %s601, [#allocation24]
        $region68: #{fwd.2} parent=11 // pred_fallthru
          _
        // Predicated region
        $region69: #{fwd.2} parent=11 // pred_check
          %p604 = pneg %p378
        $region70: #{fwd.2} parent=11 // pred_check_branch
          %606 = sbr.rel (%p604) target = $region72
        $region71: #{fwd.2} parent=11 // pred_region
          %s608 = ssub.s32 2048, 2048
          %609 = vsyncadd [#allocation27], %s608
          %s610 = sshll.u32 [#allocation26], 4
          %s611 = int_to_ptr.vmem [resolvable:$true] %s610
          %616 = dma.hbm_to_vmem [thread:$0]  %s15, 2048, %s611, [#allocation27], 64, 64, 4
        $region72: #{fwd.2} parent=11 // pred_fallthru
          _
        // Predicated region
        $region73: #{fwd.2} parent=11 // pred_check
          %p617 = pneg %p399
        $region74: #{fwd.2} parent=11 // pred_check_branch
          %619 = sbr.rel (%p617) target = $region76
        $region75: #{fwd.2} parent=11 // pred_region
          %s621 = ssub.s32 16, 16
          %622 = vsyncadd [#allocation27], %s621
          %s624 = sshll.u32 [#allocation28], 4
          %s625 = int_to_ptr.vmem [resolvable:$true] %s624
          %627 = dma.hbm_to_vmem [thread:$0]  %s16, 16, %s625, [#allocation27]
        $region76: #{fwd.2} parent=11 // pred_fallthru
          _
      $region12: #{fwd.2} parent=5 // pred_fallthru
        _
      %p628 = scmp.lt.s32.totalorder %s37, 2
      // Predicated region
      $region77: #{fwd.2} parent=5 // pred_check
        %p629 = pneg %p628
      $region78: #{fwd.2} parent=5 // pred_check_branch
        %631 = sbr.rel (%p629) target = $region80
      $region79: #{fwd.2} parent=5 // pred_region
        // Predicated region
        $region81: #{fwd.2} parent=79 // pred_check
          %p632 = pneg %p57
        $region82: #{fwd.2} parent=79 // pred_check_branch
          %634 = sbr.rel (%p632) target = $region84
        $region83: #{fwd.2} parent=79 // pred_region
          %s635 = sand.u32 %s47, 1
          %s636 = scalar_lea.sflag [#allocation3], %s635
          %s637 = sand.u32 %s47, 1
          %s638 = smul.addr %s637, 8
          %s639 = scalar_lea.vmem [#allocation2], %s638
          %s641 = ssub.s32 128, 128
          %642 = vsyncadd %s636, %s641
          %s643 = smul.addr %s37, 128
          %s644 = scalar_lea.hbm %s0, %s643
          %s646 = sshll.u32 %s639, 4
          %s647 = int_to_ptr.vmem [resolvable:$true] %s646
          %649 = dma.hbm_to_vmem [thread:$0]  %s644, 128, %s647, %s636
        $region84: #{fwd.2} parent=79 // pred_fallthru
          _
      $region80: #{fwd.2} parent=5 // pred_fallthru
        _
      %p650 = scmp.le.s32.totalorder 1, %s37
      %p651 = scmp.lt.s32.totalorder %s37, 3
      %p652 = pnand %p650, %p651
      %p653 = pneg %p652
      // Predicated region
      $region85: #{fwd.2} parent=5 // pred_check
        _
      $region86: #{fwd.2} parent=5 // pred_check_branch
        %655 = sbr.rel (%p652) target = $region88
      $region87: #{fwd.2} parent=5 // pred_region
        %s656 = ssub.s32 %s37, 1
        %s657 = sand.u32 %s50, 1
        %s658 = scalar_lea.sflag [#allocation3], %s657
        %s659 = sand.u32 %s50, 1
        %s660 = smul.addr %s659, 8
        %s661 = scalar_lea.vmem [#allocation2], %s660
        // Predicated region
        $region89: #{fwd.2} parent=87 // pred_check
          %p662 = pneg %p63
        $region90: #{fwd.2} parent=87 // pred_check_branch
          %664 = sbr.rel (%p662) target = $region92
        $region91: #{fwd.2} parent=87 // pred_region
          %665 = dma.done %s658, 128
        $region92: #{fwd.2} parent=87 // pred_fallthru
          _
        // Predicated region
        $region93: #{fwd.2} parent=87 // pred_check
          %p666 = pneg %p84
        $region94: #{fwd.2} parent=87 // pred_check_branch
          %668 = sbr.rel (%p666) target = $region96
        $region95: #{fwd.2} parent=87 // pred_region
          %669 = dma.done [#allocation6], 16
        $region96: #{fwd.2} parent=87 // pred_fallthru
          _
        // Predicated region
        $region97: #{fwd.2} parent=87 // pred_check
          %p670 = pneg %p105
        $region98: #{fwd.2} parent=87 // pred_check_branch
          %672 = sbr.rel (%p670) target = $region100
        $region99: #{fwd.2} parent=87 // pred_region
          %673 = dma.done [#allocation6], 16
        $region100: #{fwd.2} parent=87 // pred_fallthru
          _
        // Predicated region
        $region101: #{fwd.2} parent=87 // pred_check
          %p674 = pneg %p126
        $region102: #{fwd.2} parent=87 // pred_check_branch
          %676 = sbr.rel (%p674) target = $region104
        $region103: #{fwd.2} parent=87 // pred_region
          %677 = dma.done [#allocation9], 1024
        $region104: #{fwd.2} parent=87 // pred_fallthru
          _
        // Predicated region
        $region105: #{fwd.2} parent=87 // pred_check
          %p678 = pneg %p147
        $region106: #{fwd.2} parent=87 // pred_check_branch
          %680 = sbr.rel (%p678) target = $region108
        $region107: #{fwd.2} parent=87 // pred_region
          %681 = dma.done [#allocation9], 16
        $region108: #{fwd.2} parent=87 // pred_fallthru
          _
        // Predicated region
        $region109: #{fwd.2} parent=87 // pred_check
          %p682 = pneg %p168
        $region110: #{fwd.2} parent=87 // pred_check_branch
          %684 = sbr.rel (%p682) target = $region112
        $region111: #{fwd.2} parent=87 // pred_region
          %685 = dma.done [#allocation12], 1024
        $region112: #{fwd.2} parent=87 // pred_fallthru
          _
        // Predicated region
        $region113: #{fwd.2} parent=87 // pred_check
          %p686 = pneg %p189
        $region114: #{fwd.2} parent=87 // pred_check_branch
          %688 = sbr.rel (%p686) target = $region116
        $region115: #{fwd.2} parent=87 // pred_region
          %689 = dma.done [#allocation12], 16
        $region116: #{fwd.2} parent=87 // pred_fallthru
          _
        // Predicated region
        $region117: #{fwd.2} parent=87 // pred_check
          %p690 = pneg %p210
        $region118: #{fwd.2} parent=87 // pred_check_branch
          %692 = sbr.rel (%p690) target = $region120
        $region119: #{fwd.2} parent=87 // pred_region
          %693 = dma.done [#allocation15], 1024
        $region120: #{fwd.2} parent=87 // pred_fallthru
          _
        // Predicated region
        $region121: #{fwd.2} parent=87 // pred_check
          %p694 = pneg %p231
        $region122: #{fwd.2} parent=87 // pred_check_branch
          %696 = sbr.rel (%p694) target = $region124
        $region123: #{fwd.2} parent=87 // pred_region
          %697 = dma.done [#allocation15], 16
        $region124: #{fwd.2} parent=87 // pred_fallthru
          _
        // Predicated region
        $region125: #{fwd.2} parent=87 // pred_check
          %p698 = pneg %p252
        $region126: #{fwd.2} parent=87 // pred_check_branch
          %700 = sbr.rel (%p698) target = $region128
        $region127: #{fwd.2} parent=87 // pred_region
          %701 = dma.done [#allocation18], 1024
        $region128: #{fwd.2} parent=87 // pred_fallthru
          _
        // Predicated region
        $region129: #{fwd.2} parent=87 // pred_check
          %p702 = pneg %p273
        $region130: #{fwd.2} parent=87 // pred_check_branch
          %704 = sbr.rel (%p702) target = $region132
        $region131: #{fwd.2} parent=87 // pred_region
          %705 = dma.done [#allocation18], 16
        $region132: #{fwd.2} parent=87 // pred_fallthru
          _
        // Predicated region
        $region133: #{fwd.2} parent=87 // pred_check
          %p706 = pneg %p294
        $region134: #{fwd.2} parent=87 // pred_check_branch
          %708 = sbr.rel (%p706) target = $region136
        $region135: #{fwd.2} parent=87 // pred_region
          %709 = dma.done [#allocation21], 16
        $region136: #{fwd.2} parent=87 // pred_fallthru
          _
        // Predicated region
        $region137: #{fwd.2} parent=87 // pred_check
          %p710 = pneg %p315
        $region138: #{fwd.2} parent=87 // pred_check_branch
          %712 = sbr.rel (%p710) target = $region140
        $region139: #{fwd.2} parent=87 // pred_region
          %713 = dma.done [#allocation21], 16
        $region140: #{fwd.2} parent=87 // pred_fallthru
          _
        // Predicated region
        $region141: #{fwd.2} parent=87 // pred_check
          %p714 = pneg %p336
        $region142: #{fwd.2} parent=87 // pred_check_branch
          %716 = sbr.rel (%p714) target = $region144
        $region143: #{fwd.2} parent=87 // pred_region
          %717 = dma.done [#allocation24], 2048
        $region144: #{fwd.2} parent=87 // pred_fallthru
          _
        // Predicated region
        $region145: #{fwd.2} parent=87 // pred_check
          %p718 = pneg %p357
        $region146: #{fwd.2} parent=87 // pred_check_branch
          %720 = sbr.rel (%p718) target = $region148
        $region147: #{fwd.2} parent=87 // pred_region
          %721 = dma.done [#allocation24], 32
        $region148: #{fwd.2} parent=87 // pred_fallthru
          _
        // Predicated region
        $region149: #{fwd.2} parent=87 // pred_check
          %p722 = pneg %p378
        $region150: #{fwd.2} parent=87 // pred_check_branch
          %724 = sbr.rel (%p722) target = $region152
        $region151: #{fwd.2} parent=87 // pred_region
          %725 = dma.done [#allocation27], 2048
        $region152: #{fwd.2} parent=87 // pred_fallthru
          _
        // Predicated region
        $region153: #{fwd.2} parent=87 // pred_check
          %p726 = pneg %p399
        $region154: #{fwd.2} parent=87 // pred_check_branch
          %728 = sbr.rel (%p726) target = $region156
        $region155: #{fwd.2} parent=87 // pred_region
          %729 = dma.done [#allocation27], 16
        $region156: #{fwd.2} parent=87 // pred_fallthru
          _
        %s730 = sand.u32 %s50, 1
        %s731 = scalar_lea.sflag [#allocation3], %s730
        %s732 = sand.u32 %s50, 1
        %s733 = smul.addr %s732, 8
        %s734 = scalar_lea.vmem [#allocation2], %s733
        %p735 = pneg %p63
        %p736 = pneg %p60
        %p737 = pneg %p84
        %p738 = pneg %p81
        %p739 = pneg %p105
        %p740 = pneg %p102
        %p741 = pneg %p126
        %p742 = pneg %p123
        %p743 = pneg %p147
        %p744 = pneg %p144
        %p745 = pneg %p168
        %p746 = pneg %p165
        %p747 = pneg %p189
        %p748 = pneg %p186
        %p749 = pneg %p210
        %p750 = pneg %p207
        %p751 = pneg %p231
        %p752 = pneg %p228
        %p753 = pneg %p252
        %p754 = pneg %p249
        %p755 = pneg %p273
        %p756 = pneg %p270
        %p757 = pneg %p294
        %p758 = pneg %p291
        %p759 = pneg %p315
        %p760 = pneg %p312
        %p761 = pneg %p336
        %p762 = pneg %p333
        %p763 = pneg %p357
        %p764 = pneg %p354
        %p765 = pneg %p378
        %p766 = pneg %p375
        %p767 = pneg %p399
        %p768 = pneg %p396
        %p769 = pneg %p425
        %p770 = pneg %p422
        %s771 = sand.u32 %s412, 1
        %s772 = scalar_lea.sflag [#allocation4], %s771
        %s773 = sand.u32 %s412, 1
        %s774 = smul.addr %s773, 8
        %s775 = scalar_lea.vmem [#allocation29], %s774
        %v777 = vld [vmem:[%s661] sm:$0xff]
        %v778 = vld [vmem:[#allocation5] sm:$0x1]
        %v779 = vld [vmem:[#allocation7] sm:$0x1]
        %v780 = vld [vmem:[#allocation8] sm:$0xf]
        %v781 = vld [vmem:[#allocation8 + $0x4] sm:$0xf]
        %v782 = vld [vmem:[#allocation8 + $0x8] sm:$0xf]
        %v783 = vld [vmem:[#allocation8 + $0xc] sm:$0xf]
        %v784 = vld [vmem:[#allocation8 + $0x10] sm:$0xf]
        %v785 = vld [vmem:[#allocation8 + $0x14] sm:$0xf]
        %v786 = vld [vmem:[#allocation8 + $0x18] sm:$0xf]
        %v787 = vld [vmem:[#allocation8 + $0x1c] sm:$0xf]
        %v788 = vld [vmem:[#allocation8 + $0x20] sm:$0xf]
        %v789 = vld [vmem:[#allocation8 + $0x24] sm:$0xf]
        %v790 = vld [vmem:[#allocation8 + $0x28] sm:$0xf]
        %v791 = vld [vmem:[#allocation8 + $0x2c] sm:$0xf]
        %v792 = vld [vmem:[#allocation8 + $0x30] sm:$0xf]
        %v793 = vld [vmem:[#allocation8 + $0x34] sm:$0xf]
        %v794 = vld [vmem:[#allocation8 + $0x38] sm:$0xf]
        %v795 = vld [vmem:[#allocation8 + $0x3c] sm:$0xf]
        %v796 = vld [vmem:[#allocation10] sm:$0x1]
        %v797 = vld [vmem:[#allocation11] sm:$0xf]
        %v798 = vld [vmem:[#allocation11 + $0x4] sm:$0xf]
        %v799 = vld [vmem:[#allocation11 + $0x8] sm:$0xf]
        %v800 = vld [vmem:[#allocation11 + $0xc] sm:$0xf]
        %v801 = vld [vmem:[#allocation11 + $0x10] sm:$0xf]
        %v802 = vld [vmem:[#allocation11 + $0x14] sm:$0xf]
        %v803 = vld [vmem:[#allocation11 + $0x18] sm:$0xf]
        %v804 = vld [vmem:[#allocation11 + $0x1c] sm:$0xf]
        %v805 = vld [vmem:[#allocation11 + $0x20] sm:$0xf]
        %v806 = vld [vmem:[#allocation11 + $0x24] sm:$0xf]
        %v807 = vld [vmem:[#allocation11 + $0x28] sm:$0xf]
        %v808 = vld [vmem:[#allocation11 + $0x2c] sm:$0xf]
        %v809 = vld [vmem:[#allocation11 + $0x30] sm:$0xf]
        %v810 = vld [vmem:[#allocation11 + $0x34] sm:$0xf]
        %v811 = vld [vmem:[#allocation11 + $0x38] sm:$0xf]
        %v812 = vld [vmem:[#allocation11 + $0x3c] sm:$0xf]
        %v813 = vld [vmem:[#allocation13] sm:$0x1]
        %v814 = vld [vmem:[#allocation14] sm:$0xf]
        %v815 = vld [vmem:[#allocation14 + $0x4] sm:$0xf]
        %v816 = vld [vmem:[#allocation14 + $0x8] sm:$0xf]
        %v817 = vld [vmem:[#allocation14 + $0xc] sm:$0xf]
        %v818 = vld [vmem:[#allocation14 + $0x10] sm:$0xf]
        %v819 = vld [vmem:[#allocation14 + $0x14] sm:$0xf]
        %v820 = vld [vmem:[#allocation14 + $0x18] sm:$0xf]
        %v821 = vld [vmem:[#allocation14 + $0x1c] sm:$0xf]
        %v822 = vld [vmem:[#allocation14 + $0x20] sm:$0xf]
        %v823 = vld [vmem:[#allocation14 + $0x24] sm:$0xf]
        %v824 = vld [vmem:[#allocation14 + $0x28] sm:$0xf]
        %v825 = vld [vmem:[#allocation14 + $0x2c] sm:$0xf]
        %v826 = vld [vmem:[#allocation14 + $0x30] sm:$0xf]
        %v827 = vld [vmem:[#allocation14 + $0x34] sm:$0xf]
        %v828 = vld [vmem:[#allocation14 + $0x38] sm:$0xf]
        %v829 = vld [vmem:[#allocation14 + $0x3c] sm:$0xf]
        %v830 = vld [vmem:[#allocation16] sm:$0x1]
        %v831 = vld [vmem:[#allocation17] sm:$0xf]
        %v832 = vld [vmem:[#allocation17 + $0x4] sm:$0xf]
        %v833 = vld [vmem:[#allocation17 + $0x8] sm:$0xf]
        %v834 = vld [vmem:[#allocation17 + $0xc] sm:$0xf]
        %v835 = vld [vmem:[#allocation17 + $0x10] sm:$0xf]
        %v836 = vld [vmem:[#allocation17 + $0x14] sm:$0xf]
        %v837 = vld [vmem:[#allocation17 + $0x18] sm:$0xf]
        %v838 = vld [vmem:[#allocation17 + $0x1c] sm:$0xf]
        %v839 = vld [vmem:[#allocation17 + $0x20] sm:$0xf]
        %v840 = vld [vmem:[#allocation17 + $0x24] sm:$0xf]
        %v841 = vld [vmem:[#allocation17 + $0x28] sm:$0xf]
        %v842 = vld [vmem:[#allocation17 + $0x2c] sm:$0xf]
        %v843 = vld [vmem:[#allocation17 + $0x30] sm:$0xf]
        %v844 = vld [vmem:[#allocation17 + $0x34] sm:$0xf]
        %v845 = vld [vmem:[#allocation17 + $0x38] sm:$0xf]
        %v846 = vld [vmem:[#allocation17 + $0x3c] sm:$0xf]
        %v847 = vld [vmem:[#allocation19] sm:$0x1]
        %v848 = vld [vmem:[#allocation20] sm:$0x1]
        %v849 = vld [vmem:[#allocation22] sm:$0x1]
        %v850 = vld [vmem:[#allocation23] sm:$0xff]
        %v851 = vld [vmem:[#allocation23 + $0x8] sm:$0xff]
        %v852 = vld [vmem:[#allocation23 + $0x10] sm:$0xff]
        %v853 = vld [vmem:[#allocation23 + $0x18] sm:$0xff]
        %v854 = vld [vmem:[#allocation23 + $0x20] sm:$0xff]
        %v855 = vld [vmem:[#allocation23 + $0x28] sm:$0xff]
        %v856 = vld [vmem:[#allocation23 + $0x30] sm:$0xff]
        %v857 = vld [vmem:[#allocation23 + $0x38] sm:$0xff]
        %v858 = vld [vmem:[#allocation23 + $0x40] sm:$0xff]
        %v859 = vld [vmem:[#allocation23 + $0x48] sm:$0xff]
        %v860 = vld [vmem:[#allocation23 + $0x50] sm:$0xff]
        %v861 = vld [vmem:[#allocation23 + $0x58] sm:$0xff]
        %v862 = vld [vmem:[#allocation23 + $0x60] sm:$0xff]
        %v863 = vld [vmem:[#allocation23 + $0x68] sm:$0xff]
        %v864 = vld [vmem:[#allocation23 + $0x70] sm:$0xff]
        %v865 = vld [vmem:[#allocation23 + $0x78] sm:$0xff]
        %v866 = vld [vmem:[#allocation25] sm:$0x3]
        %v867 = vld [vmem:[#allocation26] sm:$0xf]
        %v868 = vld [vmem:[#allocation26 + $0x4] sm:$0xf]
        %v869 = vld [vmem:[#allocation26 + $0x8] sm:$0xf]
        %v870 = vld [vmem:[#allocation26 + $0xc] sm:$0xf]
        %v871 = vld [vmem:[#allocation26 + $0x10] sm:$0xf]
        %v872 = vld [vmem:[#allocation26 + $0x14] sm:$0xf]
        %v873 = vld [vmem:[#allocation26 + $0x18] sm:$0xf]
        %v874 = vld [vmem:[#allocation26 + $0x1c] sm:$0xf]
        %v875 = vld [vmem:[#allocation26 + $0x20] sm:$0xf]
        %v876 = vld [vmem:[#allocation26 + $0x24] sm:$0xf]
        %v877 = vld [vmem:[#allocation26 + $0x28] sm:$0xf]
        %v878 = vld [vmem:[#allocation26 + $0x2c] sm:$0xf]
        %v879 = vld [vmem:[#allocation26 + $0x30] sm:$0xf]
        %v880 = vld [vmem:[#allocation26 + $0x34] sm:$0xf]
        %v881 = vld [vmem:[#allocation26 + $0x38] sm:$0xf]
        %v882 = vld [vmem:[#allocation26 + $0x3c] sm:$0xf]
        %v883 = vld [vmem:[#allocation26 + $0x40] sm:$0xf]
        %v884 = vld [vmem:[#allocation26 + $0x44] sm:$0xf]
        %v885 = vld [vmem:[#allocation26 + $0x48] sm:$0xf]
        %v886 = vld [vmem:[#allocation26 + $0x4c] sm:$0xf]
        %v887 = vld [vmem:[#allocation26 + $0x50] sm:$0xf]
        %v888 = vld [vmem:[#allocation26 + $0x54] sm:$0xf]
        %v889 = vld [vmem:[#allocation26 + $0x58] sm:$0xf]
        %v890 = vld [vmem:[#allocation26 + $0x5c] sm:$0xf]
        %v891 = vld [vmem:[#allocation26 + $0x60] sm:$0xf]
        %v892 = vld [vmem:[#allocation26 + $0x64] sm:$0xf]
        %v893 = vld [vmem:[#allocation26 + $0x68] sm:$0xf]
        %v894 = vld [vmem:[#allocation26 + $0x6c] sm:$0xf]
        %v895 = vld [vmem:[#allocation26 + $0x70] sm:$0xf]
        %v896 = vld [vmem:[#allocation26 + $0x74] sm:$0xf]
        %v897 = vld [vmem:[#allocation26 + $0x78] sm:$0xf]
        %v898 = vld [vmem:[#allocation26 + $0x7c] sm:$0xf]
        %v899 = vld [vmem:[#allocation28] sm:$0x1]
        %900 = vadd.xlane.f32.xlu0 %v777
        %v901 = vpop.xlane.xlu0 %900
        %v902 = vrcp.pop 128.0
        %v903 = vmul.f32 %v901, %v902
        %v904 = vsub.f32 %v777, %v903
        %v905 = vmul.f32 %v904, %v904
        %906 = vadd.xlane.f32.xlu0 %v905
        %v907 = vpop.xlane.xlu0 %906
        %v908 = vmul.f32 %v907, %v902
        %v909 = vadd.f32 %v908, 1e-12
        %v910 = vrsqrt.pop %v909
        %v911 = vmul.f32 %v904, %v910
        %v913 = vlaneseq
        %v914 = vshrl.u32 %v913, 7
        %v915 = vsub.s32 0, %v914
        %v916 = vrot.slane %v778, %v915
        %v918 = vmul.f32 %v911, %v916
        %v920 = vlaneseq
        %v921 = vshrl.u32 %v920, 7
        %v922 = vsub.s32 0, %v921
        %v923 = vrot.slane %v779, %v922
        %v925 = vadd.f32 %v918, %v923
        %v926 = vpack.c.bf16 %v925, %v925
        %v928 = vlaneseq
        %v929 = vshrl.u32 %v928, 7
        %v930 = vsub.s32 0, %v929
        %v931 = vrot.slane %v796, %v930
        %v949 = vunpack.c.l.b16 %v780
        %v950 = vunpack.c.l.b16 %v781
        %v951 = vunpack.c.l.b16 %v782
        %v952 = vunpack.c.l.b16 %v783
        %v953 = vunpack.c.l.b16 %v784
        %v954 = vunpack.c.l.b16 %v785
        %v955 = vunpack.c.l.b16 %v786
        %v956 = vunpack.c.l.b16 %v787
        %v957 = vunpack.c.l.b16 %v788
        %v958 = vunpack.c.l.b16 %v789
        %v959 = vunpack.c.l.b16 %v790
        %v960 = vunpack.c.l.b16 %v791
        %v961 = vunpack.c.l.b16 %v792
        %v962 = vunpack.c.l.b16 %v793
        %v963 = vunpack.c.l.b16 %v794
        %v964 = vunpack.c.l.b16 %v795
        %v965 = vpack.c.b16 %v950, %v949
        %v966 = vpack.c.b16 %v952, %v951
        %v967 = vpack.c.b16 %v954, %v953
        %v968 = vpack.c.b16 %v956, %v955
        %v969 = vpack.c.b16 %v958, %v957
        %v970 = vpack.c.b16 %v960, %v959
        %v971 = vpack.c.b16 %v962, %v961
        %v972 = vpack.c.b16 %v964, %v963
        %981 = vmatprep.subr.bf16.mxu0 0
        %982 = vmatpush1.bf16.msra.mxu0 %v965
        %983 = vmatprep.subr.bf16.mxu0 0
        %984 = vmatpush1.bf16.msra.mxu0 %v966
        %985 = vmatprep.subr.bf16.mxu0 0
        %986 = vmatpush1.bf16.msra.mxu0 %v967
        %987 = vmatprep.subr.bf16.mxu0 0
        %988 = vmatpush1.bf16.msra.mxu0 %v968
        %989 = vmatprep.subr.bf16.mxu0 0
        %990 = vmatpush1.bf16.msra.mxu0 %v969
        %991 = vmatprep.subr.bf16.mxu0 0
        %992 = vmatpush1.bf16.msra.mxu0 %v970
        %993 = vmatprep.subr.bf16.mxu0 0
        %994 = vmatpush1.bf16.msra.mxu0 %v971
        %995 = vmatprep.subr.bf16.mxu0 0
        %996 = vmatpush1.bf16.msra.mxu0 %v972
        %997 = vmatprep.subr.bf16.mxu0 0
        %998 = vmatpush1.bf16.msra.mxu0 0
        %999 = vmatprep.subr.bf16.mxu0 0
        %1000 = vmatpush1.bf16.msra.mxu0 0
        %1001 = vmatprep.subr.bf16.mxu0 0
        %1002 = vmatpush1.bf16.msra.mxu0 0
        %1003 = vmatprep.subr.bf16.mxu0 0
        %1004 = vmatpush1.bf16.msra.mxu0 0
        %1005 = vmatprep.subr.bf16.mxu0 0
        %1006 = vmatpush1.bf16.msra.mxu0 0
        %1007 = vmatprep.subr.bf16.mxu0 0
        %1008 = vmatpush1.bf16.msra.mxu0 0
        %1009 = vmatprep.subr.bf16.mxu0 0
        %1010 = vmatpush1.bf16.msra.mxu0 0
        %1011 = vmatprep.subr.bf16.mxu0 0
        %1012 = vmatpush1.bf16.msra.mxu0 0
        %1013 = vmatprep.mubr.bf16.mxu0 0
        %1014 = vmatmul.mubr.bf16.gmra.mrb[0].mxu0 %v926
        %v1015 = vpop.f32.mrb[0].mxu0
        %v1016 = vadd.f32 %v931, %v1015
        %v1017 = vpop.f32.mrb[0].mxu0
        %v1018 = vpop.f32.mrb[0].mxu0
        %v1019 = vpop.f32.mrb[0].mxu0
        %1020 = vdwg.mxu0
        %v1022 = vlaneseq
        %v1023 = vshrl.u32 %v1022, 7
        %v1024 = vsub.s32 0, %v1023
        %v1025 = vrot.slane %v813, %v1024
        %v1043 = vunpack.c.l.b16 %v797
        %v1044 = vunpack.c.l.b16 %v798
        %v1045 = vunpack.c.l.b16 %v799
        %v1046 = vunpack.c.l.b16 %v800
        %v1047 = vunpack.c.l.b16 %v801
        %v1048 = vunpack.c.l.b16 %v802
        %v1049 = vunpack.c.l.b16 %v803
        %v1050 = vunpack.c.l.b16 %v804
        %v1051 = vunpack.c.l.b16 %v805
        %v1052 = vunpack.c.l.b16 %v806
        %v1053 = vunpack.c.l.b16 %v807
        %v1054 = vunpack.c.l.b16 %v808
        %v1055 = vunpack.c.l.b16 %v809
        %v1056 = vunpack.c.l.b16 %v810
        %v1057 = vunpack.c.l.b16 %v811
        %v1058 = vunpack.c.l.b16 %v812
        %v1059 = vpack.c.b16 %v1044, %v1043
        %v1060 = vpack.c.b16 %v1046, %v1045
        %v1061 = vpack.c.b16 %v1048, %v1047
        %v1062 = vpack.c.b16 %v1050, %v1049
        %v1063 = vpack.c.b16 %v1052, %v1051
        %v1064 = vpack.c.b16 %v1054, %v1053
        %v1065 = vpack.c.b16 %v1056, %v1055
        %v1066 = vpack.c.b16 %v1058, %v1057
        %1075 = vmatprep.subr.bf16.mxu0 0
        %1076 = vmatpush1.bf16.msra.mxu0 %v1059
        %1077 = vmatprep.subr.bf16.mxu0 0
        %1078 = vmatpush1.bf16.msra.mxu0 %v1060
        %1079 = vmatprep.subr.bf16.mxu0 0
        %1080 = vmatpush1.bf16.msra.mxu0 %v1061
        %1081 = vmatprep.subr.bf16.mxu0 0
        %1082 = vmatpush1.bf16.msra.mxu0 %v1062
        %1083 = vmatprep.subr.bf16.mxu0 0
        %1084 = vmatpush1.bf16.msra.mxu0 %v1063
        %1085 = vmatprep.subr.bf16.mxu0 0
        %1086 = vmatpush1.bf16.msra.mxu0 %v1064
        %1087 = vmatprep.subr.bf16.mxu0 0
        %1088 = vmatpush1.bf16.msra.mxu0 %v1065
        %1089 = vmatprep.subr.bf16.mxu0 0
        %1090 = vmatpush1.bf16.msra.mxu0 %v1066
        %1091 = vmatprep.subr.bf16.mxu0 0
        %1092 = vmatpush1.bf16.msra.mxu0 0
        %1093 = vmatprep.subr.bf16.mxu0 0
        %1094 = vmatpush1.bf16.msra.mxu0 0
        %1095 = vmatprep.subr.bf16.mxu0 0
        %1096 = vmatpush1.bf16.msra.mxu0 0
        %1097 = vmatprep.subr.bf16.mxu0 0
        %1098 = vmatpush1.bf16.msra.mxu0 0
        %1099 = vmatprep.subr.bf16.mxu0 0
        %1100 = vmatpush1.bf16.msra.mxu0 0
        %1101 = vmatprep.subr.bf16.mxu0 0
        %1102 = vmatpush1.bf16.msra.mxu0 0
        %1103 = vmatprep.subr.bf16.mxu0 0
        %1104 = vmatpush1.bf16.msra.mxu0 0
        %1105 = vmatprep.subr.bf16.mxu0 0
        %1106 = vmatpush1.bf16.msra.mxu0 0
        %1107 = vmatprep.mubr.bf16.mxu0 0
        %1108 = vmatmul.mubr.bf16.gmra.mrb[0].mxu0 %v926
        %v1109 = vpop.f32.mrb[0].mxu0
        %v1110 = vadd.f32 %v1025, %v1109
        %v1111 = vpop.f32.mrb[0].mxu0
        %v1112 = vpop.f32.mrb[0].mxu0
        %v1113 = vpop.f32.mrb[0].mxu0
        %1114 = vdwg.mxu0
        %v1116 = vlaneseq
        %v1117 = vshrl.u32 %v1116, 7
        %v1118 = vsub.s32 0, %v1117
        %v1119 = vrot.slane %v830, %v1118
        %v1137 = vunpack.c.l.b16 %v814
        %v1138 = vunpack.c.l.b16 %v815
        %v1139 = vunpack.c.l.b16 %v816
        %v1140 = vunpack.c.l.b16 %v817
        %v1141 = vunpack.c.l.b16 %v818
        %v1142 = vunpack.c.l.b16 %v819
        %v1143 = vunpack.c.l.b16 %v820
        %v1144 = vunpack.c.l.b16 %v821
        %v1145 = vunpack.c.l.b16 %v822
        %v1146 = vunpack.c.l.b16 %v823
        %v1147 = vunpack.c.l.b16 %v824
        %v1148 = vunpack.c.l.b16 %v825
        %v1149 = vunpack.c.l.b16 %v826
        %v1150 = vunpack.c.l.b16 %v827
        %v1151 = vunpack.c.l.b16 %v828
        %v1152 = vunpack.c.l.b16 %v829
        %v1153 = vpack.c.b16 %v1138, %v1137
        %v1154 = vpack.c.b16 %v1140, %v1139
        %v1155 = vpack.c.b16 %v1142, %v1141
        %v1156 = vpack.c.b16 %v1144, %v1143
        %v1157 = vpack.c.b16 %v1146, %v1145
        %v1158 = vpack.c.b16 %v1148, %v1147
        %v1159 = vpack.c.b16 %v1150, %v1149
        %v1160 = vpack.c.b16 %v1152, %v1151
        %1169 = vmatprep.subr.bf16.mxu0 0
        %1170 = vmatpush1.bf16.msra.mxu0 %v1153
        %1171 = vmatprep.subr.bf16.mxu0 0
        %1172 = vmatpush1.bf16.msra.mxu0 %v1154
        %1173 = vmatprep.subr.bf16.mxu0 0
        %1174 = vmatpush1.bf16.msra.mxu0 %v1155
        %1175 = vmatprep.subr.bf16.mxu0 0
        %1176 = vmatpush1.bf16.msra.mxu0 %v1156
        %1177 = vmatprep.subr.bf16.mxu0 0
        %1178 = vmatpush1.bf16.msra.mxu0 %v1157
        %1179 = vmatprep.subr.bf16.mxu0 0
        %1180 = vmatpush1.bf16.msra.mxu0 %v1158
        %1181 = vmatprep.subr.bf16.mxu0 0
        %1182 = vmatpush1.bf16.msra.mxu0 %v1159
        %1183 = vmatprep.subr.bf16.mxu0 0
        %1184 = vmatpush1.bf16.msra.mxu0 %v1160
        %1185 = vmatprep.subr.bf16.mxu0 0
        %1186 = vmatpush1.bf16.msra.mxu0 0
        %1187 = vmatprep.subr.bf16.mxu0 0
        %1188 = vmatpush1.bf16.msra.mxu0 0
        %1189 = vmatprep.subr.bf16.mxu0 0
        %1190 = vmatpush1.bf16.msra.mxu0 0
        %1191 = vmatprep.subr.bf16.mxu0 0
        %1192 = vmatpush1.bf16.msra.mxu0 0
        %1193 = vmatprep.subr.bf16.mxu0 0
        %1194 = vmatpush1.bf16.msra.mxu0 0
        %1195 = vmatprep.subr.bf16.mxu0 0
        %1196 = vmatpush1.bf16.msra.mxu0 0
        %1197 = vmatprep.subr.bf16.mxu0 0
        %1198 = vmatpush1.bf16.msra.mxu0 0
        %1199 = vmatprep.subr.bf16.mxu0 0
        %1200 = vmatpush1.bf16.msra.mxu0 0
        %1201 = vmatprep.mubr.bf16.mxu0 0
        %1202 = vmatmul.mubr.bf16.gmra.mrb[0].mxu0 %v926
        %v1203 = vpop.f32.mrb[0].mxu0
        %v1204 = vadd.f32 %v1119, %v1203
        %v1205 = vpop.f32.mrb[0].mxu0
        %v1206 = vpop.f32.mrb[0].mxu0
        %v1207 = vpop.f32.mrb[0].mxu0
        %1208 = vdwg.mxu0
        %1210 = vrot.lane.b32.xlu0 %v1016, 96
        %v1211 = vpop.permute.xlu0 %1210
        %1213 = vrot.lane.b32.xlu0 %v1016, 64
        %v1214 = vpop.permute.xlu0 %1213
        %1216 = vrot.lane.b32.xlu0 %v1016, 32
        %v1217 = vpop.permute.xlu0 %1216
        %v1219 = vcombine.low %v1016, %v1214
        %v1220 = vcombine.high %v1016, %v1214
        %v1222 = vunpack.c.l.s4 1983009808
        %v1223 = vunpack.c.0.s8 %v1222
        %v1224 = vlaneseq
        %v1225 = vshrl.u32 %v1224, 7
        %v1226 = vsub.s32 %v1223, %v1225
        %v1227 = vrot.slane %v1219, %v1226
        %v1229 = vunpack.c.l.s4 1983009808
        %v1230 = vunpack.c.0.s8 %v1229
        %v1231 = vlaneseq
        %v1232 = vshrl.u32 %v1231, 7
        %v1233 = vsub.s32 %v1230, %v1232
        %v1234 = vrot.slane %v1220, %v1233
        %v1235 = vcombine.low %v1211, %v1217
        %v1236 = vcombine.high %v1211, %v1217
        %v1238 = vunpack.c.l.s4 1983009808
        %v1239 = vunpack.c.0.s8 %v1238
        %v1240 = vlaneseq
        %v1241 = vshrl.u32 %v1240, 7
        %v1242 = vsub.s32 %v1239, %v1241
        %v1243 = vrot.slane %v1235, %v1242
        %v1245 = vunpack.c.l.s4 1983009808
        %v1246 = vunpack.c.0.s8 %v1245
        %v1247 = vlaneseq
        %v1248 = vshrl.u32 %v1247, 7
        %v1249 = vsub.s32 %v1246, %v1248
        %v1250 = vrot.slane %v1236, %v1249
        %v1251 = vcombine.low %v1227, %v1243
        %v1252 = vcombine.high %v1227, %v1243
        %v1254 = vunpack.c.l.s4 1934713408
        %v1255 = vunpack.c.0.s8 %v1254
        %v1256 = vlaneseq
        %v1257 = vshrl.u32 %v1256, 7
        %v1258 = vsub.s32 %v1255, %v1257
        %v1259 = vrot.slane %v1251, %v1258
        %v1261 = vunpack.c.l.s4 1934713408
        %v1262 = vunpack.c.0.s8 %v1261
        %v1263 = vlaneseq
        %v1264 = vshrl.u32 %v1263, 7
        %v1265 = vsub.s32 %v1262, %v1264
        %v1266 = vrot.slane %v1252, %v1265
        %v1267 = vcombine.low %v1234, %v1250
        %v1268 = vcombine.high %v1234, %v1250
        %v1270 = vunpack.c.l.s4 1934713408
        %v1271 = vunpack.c.0.s8 %v1270
        %v1272 = vlaneseq
        %v1273 = vshrl.u32 %v1272, 7
        %v1274 = vsub.s32 %v1271, %v1273
        %v1275 = vrot.slane %v1267, %v1274
        %v1277 = vunpack.c.l.s4 1934713408
        %v1278 = vunpack.c.0.s8 %v1277
        %v1279 = vlaneseq
        %v1280 = vshrl.u32 %v1279, 7
        %v1281 = vsub.s32 %v1278, %v1280
        %v1282 = vrot.slane %v1268, %v1281
        %v1283 = vcombine.high %v1259, 0.0
        %v1284 = vcombine.high %v1266, 0.0
        %v1285 = vcombine.high %v1275, 0.0
        %v1286 = vcombine.high %v1282, 0.0
        %v1287 = vcombine.low %v1259, %v1266
        %v1289 = vunpack.c.l.s4 1983009808
        %v1290 = vunpack.c.0.s8 %v1289
        %v1291 = vlaneseq
        %v1292 = vshrl.u32 %v1291, 7
        %v1293 = vsub.s32 %v1290, %v1292
        %v1294 = vrot.slane %v1287, %v1293
        %v1295 = vcombine.low %v1283, %v1284
        %v1297 = vunpack.c.l.s4 1983009808
        %v1298 = vunpack.c.0.s8 %v1297
        %v1299 = vlaneseq
        %v1300 = vshrl.u32 %v1299, 7
        %v1301 = vsub.s32 %v1298, %v1300
        %v1302 = vrot.slane %v1295, %v1301
        %v1303 = vcombine.low %v1275, %v1282
        %v1305 = vunpack.c.l.s4 1983009808
        %v1306 = vunpack.c.0.s8 %v1305
        %v1307 = vlaneseq
        %v1308 = vshrl.u32 %v1307, 7
        %v1309 = vsub.s32 %v1306, %v1308
        %v1310 = vrot.slane %v1303, %v1309
        %v1311 = vcombine.low %v1285, %v1286
        %v1313 = vunpack.c.l.s4 1983009808
        %v1314 = vunpack.c.0.s8 %v1313
        %v1315 = vlaneseq
        %v1316 = vshrl.u32 %v1315, 7
        %v1317 = vsub.s32 %v1314, %v1316
        %v1318 = vrot.slane %v1311, %v1317
        %v1319 = vcombine.low %v1294, %v1302
        %v1320 = vcombine.high %v1294, %v1302
        %v1322 = vunpack.c.l.s4 1934713408
        %v1323 = vunpack.c.0.s8 %v1322
        %v1324 = vlaneseq
        %v1325 = vshrl.u32 %v1324, 7
        %v1326 = vsub.s32 %v1323, %v1325
        %v1327 = vrot.slane %v1319, %v1326
        %v1329 = vunpack.c.l.s4 1934713408
        %v1330 = vunpack.c.0.s8 %v1329
        %v1331 = vlaneseq
        %v1332 = vshrl.u32 %v1331, 7
        %v1333 = vsub.s32 %v1330, %v1332
        %v1334 = vrot.slane %v1320, %v1333
        %v1335 = vcombine.low %v1310, %v1318
        %v1336 = vcombine.high %v1310, %v1318
        %v1338 = vunpack.c.l.s4 1934713408
        %v1339 = vunpack.c.0.s8 %v1338
        %v1340 = vlaneseq
        %v1341 = vshrl.u32 %v1340, 7
        %v1342 = vsub.s32 %v1339, %v1341
        %v1343 = vrot.slane %v1335, %v1342
        %v1345 = vunpack.c.l.s4 1934713408
        %v1346 = vunpack.c.0.s8 %v1345
        %v1347 = vlaneseq
        %v1348 = vshrl.u32 %v1347, 7
        %v1349 = vsub.s32 %v1346, %v1348
        %v1350 = vrot.slane %v1336, %v1349
        %v1351 = vcombine.low %v1327, %v1343
        %v1352 = vcombine.high %v1327, %v1343
        %v1353 = vcombine.low %v1334, %v1350
        %v1354 = vcombine.high %v1334, %v1350
        %v1355 = vpack.c.bf16 %v1351, %v1351
        %v1356 = vpack.c.bf16 %v1352, %v1352
        %v1357 = vpack.c.bf16 %v1353, %v1353
        %v1358 = vpack.c.bf16 %v1354, %v1354
        %1360 = vrot.lane.b32.xlu0 %v1110, 96
        %v1361 = vpop.permute.xlu0 %1360
        %1363 = vrot.lane.b32.xlu0 %v1110, 64
        %v1364 = vpop.permute.xlu0 %1363
        %1366 = vrot.lane.b32.xlu0 %v1110, 32
        %v1367 = vpop.permute.xlu0 %1366
        %v1369 = vcombine.low %v1110, %v1364
        %v1370 = vcombine.high %v1110, %v1364
        %v1372 = vunpack.c.l.s4 1983009808
        %v1373 = vunpack.c.0.s8 %v1372
        %v1374 = vlaneseq
        %v1375 = vshrl.u32 %v1374, 7
        %v1376 = vsub.s32 %v1373, %v1375
        %v1377 = vrot.slane %v1369, %v1376
        %v1379 = vunpack.c.l.s4 1983009808
        %v1380 = vunpack.c.0.s8 %v1379
        %v1381 = vlaneseq
        %v1382 = vshrl.u32 %v1381, 7
        %v1383 = vsub.s32 %v1380, %v1382
        %v1384 = vrot.slane %v1370, %v1383
        %v1385 = vcombine.low %v1361, %v1367
        %v1386 = vcombine.high %v1361, %v1367
        %v1388 = vunpack.c.l.s4 1983009808
        %v1389 = vunpack.c.0.s8 %v1388
        %v1390 = vlaneseq
        %v1391 = vshrl.u32 %v1390, 7
        %v1392 = vsub.s32 %v1389, %v1391
        %v1393 = vrot.slane %v1385, %v1392
        %v1395 = vunpack.c.l.s4 1983009808
        %v1396 = vunpack.c.0.s8 %v1395
        %v1397 = vlaneseq
        %v1398 = vshrl.u32 %v1397, 7
        %v1399 = vsub.s32 %v1396, %v1398
        %v1400 = vrot.slane %v1386, %v1399
        %v1401 = vcombine.low %v1377, %v1393
        %v1402 = vcombine.high %v1377, %v1393
        %v1404 = vunpack.c.l.s4 1934713408
        %v1405 = vunpack.c.0.s8 %v1404
        %v1406 = vlaneseq
        %v1407 = vshrl.u32 %v1406, 7
        %v1408 = vsub.s32 %v1405, %v1407
        %v1409 = vrot.slane %v1401, %v1408
        %v1411 = vunpack.c.l.s4 1934713408
        %v1412 = vunpack.c.0.s8 %v1411
        %v1413 = vlaneseq
        %v1414 = vshrl.u32 %v1413, 7
        %v1415 = vsub.s32 %v1412, %v1414
        %v1416 = vrot.slane %v1402, %v1415
        %v1417 = vcombine.low %v1384, %v1400
        %v1418 = vcombine.high %v1384, %v1400
        %v1420 = vunpack.c.l.s4 1934713408
        %v1421 = vunpack.c.0.s8 %v1420
        %v1422 = vlaneseq
        %v1423 = vshrl.u32 %v1422, 7
        %v1424 = vsub.s32 %v1421, %v1423
        %v1425 = vrot.slane %v1417, %v1424
        %v1427 = vunpack.c.l.s4 1934713408
        %v1428 = vunpack.c.0.s8 %v1427
        %v1429 = vlaneseq
        %v1430 = vshrl.u32 %v1429, 7
        %v1431 = vsub.s32 %v1428, %v1430
        %v1432 = vrot.slane %v1418, %v1431
        %v1433 = vcombine.high %v1409, 0.0
        %v1434 = vcombine.high %v1416, 0.0
        %v1435 = vcombine.high %v1425, 0.0
        %v1436 = vcombine.high %v1432, 0.0
        %v1437 = vcombine.low %v1409, %v1416
        %v1439 = vunpack.c.l.s4 1983009808
        %v1440 = vunpack.c.0.s8 %v1439
        %v1441 = vlaneseq
        %v1442 = vshrl.u32 %v1441, 7
        %v1443 = vsub.s32 %v1440, %v1442
        %v1444 = vrot.slane %v1437, %v1443
        %v1445 = vcombine.low %v1433, %v1434
        %v1447 = vunpack.c.l.s4 1983009808
        %v1448 = vunpack.c.0.s8 %v1447
        %v1449 = vlaneseq
        %v1450 = vshrl.u32 %v1449, 7
        %v1451 = vsub.s32 %v1448, %v1450
        %v1452 = vrot.slane %v1445, %v1451
        %v1453 = vcombine.low %v1425, %v1432
        %v1455 = vunpack.c.l.s4 1983009808
        %v1456 = vunpack.c.0.s8 %v1455
        %v1457 = vlaneseq
        %v1458 = vshrl.u32 %v1457, 7
        %v1459 = vsub.s32 %v1456, %v1458
        %v1460 = vrot.slane %v1453, %v1459
        %v1461 = vcombine.low %v1435, %v1436
        %v1463 = vunpack.c.l.s4 1983009808
        %v1464 = vunpack.c.0.s8 %v1463
        %v1465 = vlaneseq
        %v1466 = vshrl.u32 %v1465, 7
        %v1467 = vsub.s32 %v1464, %v1466
        %v1468 = vrot.slane %v1461, %v1467
        %v1469 = vcombine.low %v1444, %v1452
        %v1470 = vcombine.high %v1444, %v1452
        %v1472 = vunpack.c.l.s4 1934713408
        %v1473 = vunpack.c.0.s8 %v1472
        %v1474 = vlaneseq
        %v1475 = vshrl.u32 %v1474, 7
        %v1476 = vsub.s32 %v1473, %v1475
        %v1477 = vrot.slane %v1469, %v1476
        %v1479 = vunpack.c.l.s4 1934713408
        %v1480 = vunpack.c.0.s8 %v1479
        %v1481 = vlaneseq
        %v1482 = vshrl.u32 %v1481, 7
        %v1483 = vsub.s32 %v1480, %v1482
        %v1484 = vrot.slane %v1470, %v1483
        %v1485 = vcombine.low %v1460, %v1468
        %v1486 = vcombine.high %v1460, %v1468
        %v1488 = vunpack.c.l.s4 1934713408
        %v1489 = vunpack.c.0.s8 %v1488
        %v1490 = vlaneseq
        %v1491 = vshrl.u32 %v1490, 7
        %v1492 = vsub.s32 %v1489, %v1491
        %v1493 = vrot.slane %v1485, %v1492
        %v1495 = vunpack.c.l.s4 1934713408
        %v1496 = vunpack.c.0.s8 %v1495
        %v1497 = vlaneseq
        %v1498 = vshrl.u32 %v1497, 7
        %v1499 = vsub.s32 %v1496, %v1498
        %v1500 = vrot.slane %v1486, %v1499
        %v1501 = vcombine.low %v1477, %v1493
        %v1502 = vcombine.high %v1477, %v1493
        %v1503 = vcombine.low %v1484, %v1500
        %v1504 = vcombine.high %v1484, %v1500
        %v1505 = vpack.c.bf16 %v1501, %v1501
        %v1506 = vpack.c.bf16 %v1502, %v1502
        %v1507 = vpack.c.bf16 %v1503, %v1503
        %v1508 = vpack.c.bf16 %v1504, %v1504
        %1510 = vrot.lane.b32.xlu0 %v1204, 96
        %v1511 = vpop.permute.xlu0 %1510
        %1513 = vrot.lane.b32.xlu0 %v1204, 64
        %v1514 = vpop.permute.xlu0 %1513
        %1516 = vrot.lane.b32.xlu0 %v1204, 32
        %v1517 = vpop.permute.xlu0 %1516
        %v1519 = vcombine.low %v1204, %v1514
        %v1520 = vcombine.high %v1204, %v1514
        %v1522 = vunpack.c.l.s4 1983009808
        %v1523 = vunpack.c.0.s8 %v1522
        %v1524 = vlaneseq
        %v1525 = vshrl.u32 %v1524, 7
        %v1526 = vsub.s32 %v1523, %v1525
        %v1527 = vrot.slane %v1519, %v1526
        %v1529 = vunpack.c.l.s4 1983009808
        %v1530 = vunpack.c.0.s8 %v1529
        %v1531 = vlaneseq
        %v1532 = vshrl.u32 %v1531, 7
        %v1533 = vsub.s32 %v1530, %v1532
        %v1534 = vrot.slane %v1520, %v1533
        %v1535 = vcombine.low %v1511, %v1517
        %v1536 = vcombine.high %v1511, %v1517
        %v1538 = vunpack.c.l.s4 1983009808
        %v1539 = vunpack.c.0.s8 %v1538
        %v1540 = vlaneseq
        %v1541 = vshrl.u32 %v1540, 7
        %v1542 = vsub.s32 %v1539, %v1541
        %v1543 = vrot.slane %v1535, %v1542
        %v1545 = vunpack.c.l.s4 1983009808
        %v1546 = vunpack.c.0.s8 %v1545
        %v1547 = vlaneseq
        %v1548 = vshrl.u32 %v1547, 7
        %v1549 = vsub.s32 %v1546, %v1548
        %v1550 = vrot.slane %v1536, %v1549
        %v1551 = vcombine.low %v1527, %v1543
        %v1552 = vcombine.high %v1527, %v1543
        %v1554 = vunpack.c.l.s4 1934713408
        %v1555 = vunpack.c.0.s8 %v1554
        %v1556 = vlaneseq
        %v1557 = vshrl.u32 %v1556, 7
        %v1558 = vsub.s32 %v1555, %v1557
        %v1559 = vrot.slane %v1551, %v1558
        %v1561 = vunpack.c.l.s4 1934713408
        %v1562 = vunpack.c.0.s8 %v1561
        %v1563 = vlaneseq
        %v1564 = vshrl.u32 %v1563, 7
        %v1565 = vsub.s32 %v1562, %v1564
        %v1566 = vrot.slane %v1552, %v1565
        %v1567 = vcombine.low %v1534, %v1550
        %v1568 = vcombine.high %v1534, %v1550
        %v1570 = vunpack.c.l.s4 1934713408
        %v1571 = vunpack.c.0.s8 %v1570
        %v1572 = vlaneseq
        %v1573 = vshrl.u32 %v1572, 7
        %v1574 = vsub.s32 %v1571, %v1573
        %v1575 = vrot.slane %v1567, %v1574
        %v1577 = vunpack.c.l.s4 1934713408
        %v1578 = vunpack.c.0.s8 %v1577
        %v1579 = vlaneseq
        %v1580 = vshrl.u32 %v1579, 7
        %v1581 = vsub.s32 %v1578, %v1580
        %v1582 = vrot.slane %v1568, %v1581
        %v1583 = vcombine.high %v1559, 0.0
        %v1584 = vcombine.high %v1566, 0.0
        %v1585 = vcombine.high %v1575, 0.0
        %v1586 = vcombine.high %v1582, 0.0
        %v1587 = vcombine.low %v1559, %v1566
        %v1589 = vunpack.c.l.s4 1983009808
        %v1590 = vunpack.c.0.s8 %v1589
        %v1591 = vlaneseq
        %v1592 = vshrl.u32 %v1591, 7
        %v1593 = vsub.s32 %v1590, %v1592
        %v1594 = vrot.slane %v1587, %v1593
        %v1595 = vcombine.low %v1583, %v1584
        %v1597 = vunpack.c.l.s4 1983009808
        %v1598 = vunpack.c.0.s8 %v1597
        %v1599 = vlaneseq
        %v1600 = vshrl.u32 %v1599, 7
        %v1601 = vsub.s32 %v1598, %v1600
        %v1602 = vrot.slane %v1595, %v1601
        %v1603 = vcombine.low %v1575, %v1582
        %v1605 = vunpack.c.l.s4 1983009808
        %v1606 = vunpack.c.0.s8 %v1605
        %v1607 = vlaneseq
        %v1608 = vshrl.u32 %v1607, 7
        %v1609 = vsub.s32 %v1606, %v1608
        %v1610 = vrot.slane %v1603, %v1609
        %v1611 = vcombine.low %v1585, %v1586
        %v1613 = vunpack.c.l.s4 1983009808
        %v1614 = vunpack.c.0.s8 %v1613
        %v1615 = vlaneseq
        %v1616 = vshrl.u32 %v1615, 7
        %v1617 = vsub.s32 %v1614, %v1616
        %v1618 = vrot.slane %v1611, %v1617
        %v1619 = vcombine.low %v1594, %v1602
        %v1620 = vcombine.high %v1594, %v1602
        %v1622 = vunpack.c.l.s4 1934713408
        %v1623 = vunpack.c.0.s8 %v1622
        %v1624 = vlaneseq
        %v1625 = vshrl.u32 %v1624, 7
        %v1626 = vsub.s32 %v1623, %v1625
        %v1627 = vrot.slane %v1619, %v1626
        %v1629 = vunpack.c.l.s4 1934713408
        %v1630 = vunpack.c.0.s8 %v1629
        %v1631 = vlaneseq
        %v1632 = vshrl.u32 %v1631, 7
        %v1633 = vsub.s32 %v1630, %v1632
        %v1634 = vrot.slane %v1620, %v1633
        %v1635 = vcombine.low %v1610, %v1618
        %v1636 = vcombine.high %v1610, %v1618
        %v1638 = vunpack.c.l.s4 1934713408
        %v1639 = vunpack.c.0.s8 %v1638
        %v1640 = vlaneseq
        %v1641 = vshrl.u32 %v1640, 7
        %v1642 = vsub.s32 %v1639, %v1641
        %v1643 = vrot.slane %v1635, %v1642
        %v1645 = vunpack.c.l.s4 1934713408
        %v1646 = vunpack.c.0.s8 %v1645
        %v1647 = vlaneseq
        %v1648 = vshrl.u32 %v1647, 7
        %v1649 = vsub.s32 %v1646, %v1648
        %v1650 = vrot.slane %v1636, %v1649
        %v1651 = vcombine.low %v1627, %v1643
        %v1652 = vcombine.high %v1627, %v1643
        %v1653 = vcombine.low %v1634, %v1650
        %v1654 = vcombine.high %v1634, %v1650
        %v1655 = vpack.c.bf16 %v1651, %v1651
        %v1656 = vpack.c.bf16 %v1652, %v1652
        %v1657 = vpack.c.bf16 %v1653, %v1653
        %v1658 = vpack.c.bf16 %v1654, %v1654
        %vm1659 = vcmask 261120
        %v1661 = vsel %vm1659, %v1355, 0
        %v1664 = vsel %vm1659, %v1505, 0
        %1666 = vmatprep.subr.bf16.mxu0 0
        %1667 = vmatpush1.bf16.xpose.msra.mxu0 %v1664
        %1668 = vmatprep.subr.bf16.mxu0 0
        %1669 = vmatpush1.bf16.xpose.msra.mxu0 0
        %1670 = vmatprep.subr.bf16.mxu0 0
        %1671 = vmatpush1.bf16.xpose.msra.mxu0 0
        %1672 = vmatprep.subr.bf16.mxu0 0
        %1673 = vmatpush1.bf16.xpose.msra.mxu0 0
        %1674 = vmatprep.subr.bf16.mxu0 0
        %1675 = vmatpush1.bf16.xpose.msra.mxu0 0
        %1676 = vmatprep.subr.bf16.mxu0 0
        %1677 = vmatpush1.bf16.xpose.msra.mxu0 0
        %1678 = vmatprep.subr.bf16.mxu0 0
        %1679 = vmatpush1.bf16.xpose.msra.mxu0 0
        %1680 = vmatprep.subr.bf16.mxu0 0
        %1681 = vmatpush1.bf16.xpose.msra.mxu0 0
        %1682 = vmatprep.subr.bf16.mxu0 0
        %1683 = vmatpush1.bf16.xpose.msra.mxu0 0
        %1684 = vmatprep.subr.bf16.mxu0 0
        %1685 = vmatpush1.bf16.xpose.msra.mxu0 0
        %1686 = vmatprep.subr.bf16.mxu0 0
        %1687 = vmatpush1.bf16.xpose.msra.mxu0 0
        %1688 = vmatprep.subr.bf16.mxu0 0
        %1689 = vmatpush1.bf16.xpose.msra.mxu0 0
        %1690 = vmatprep.subr.bf16.mxu0 0
        %1691 = vmatpush1.bf16.xpose.msra.mxu0 0
        %1692 = vmatprep.subr.bf16.mxu0 0
        %1693 = vmatpush1.bf16.xpose.msra.mxu0 0
        %1694 = vmatprep.subr.bf16.mxu0 0
        %1695 = vmatpush1.bf16.xpose.msra.mxu0 0
        %1696 = vmatprep.subr.bf16.mxu0 0
        %1697 = vmatpush1.bf16.xpose.msra.mxu0 0
        %1698 = vmatprep.mubr.bf16.mxu0 0
        %1699 = vmatmul.mubr.bf16.gmra.mrb[0].mxu0 %v1661
        %v1700 = vpop.f32.mrb[0].mxu0
        %v1701 = vadd.f32 0.0, %v1700
        %v1702 = vpop.f32.mrb[0].mxu0
        %v1703 = vpop.f32.mrb[0].mxu0
        %v1704 = vpop.f32.mrb[0].mxu0
        %1705 = vdwg.mxu0
        %v1707 = vsel %vm1659, %v1356, 0
        %v1710 = vsel %vm1659, %v1506, 0
        %1712 = vmatprep.subr.bf16.mxu0 0
        %1713 = vmatpush1.bf16.xpose.msra.mxu0 %v1710
        %1714 = vmatprep.subr.bf16.mxu0 0
        %1715 = vmatpush1.bf16.xpose.msra.mxu0 0
        %1716 = vmatprep.subr.bf16.mxu0 0
        %1717 = vmatpush1.bf16.xpose.msra.mxu0 0
        %1718 = vmatprep.subr.bf16.mxu0 0
        %1719 = vmatpush1.bf16.xpose.msra.mxu0 0
        %1720 = vmatprep.subr.bf16.mxu0 0
        %1721 = vmatpush1.bf16.xpose.msra.mxu0 0
        %1722 = vmatprep.subr.bf16.mxu0 0
        %1723 = vmatpush1.bf16.xpose.msra.mxu0 0
        %1724 = vmatprep.subr.bf16.mxu0 0
        %1725 = vmatpush1.bf16.xpose.msra.mxu0 0
        %1726 = vmatprep.subr.bf16.mxu0 0
        %1727 = vmatpush1.bf16.xpose.msra.mxu0 0
        %1728 = vmatprep.subr.bf16.mxu0 0
        %1729 = vmatpush1.bf16.xpose.msra.mxu0 0
        %1730 = vmatprep.subr.bf16.mxu0 0
        %1731 = vmatpush1.bf16.xpose.msra.mxu0 0
        %1732 = vmatprep.subr.bf16.mxu0 0
        %1733 = vmatpush1.bf16.xpose.msra.mxu0 0
        %1734 = vmatprep.subr.bf16.mxu0 0
        %1735 = vmatpush1.bf16.xpose.msra.mxu0 0
        %1736 = vmatprep.subr.bf16.mxu0 0
        %1737 = vmatpush1.bf16.xpose.msra.mxu0 0
        %1738 = vmatprep.subr.bf16.mxu0 0
        %1739 = vmatpush1.bf16.xpose.msra.mxu0 0
        %1740 = vmatprep.subr.bf16.mxu0 0
        %1741 = vmatpush1.bf16.xpose.msra.mxu0 0
        %1742 = vmatprep.subr.bf16.mxu0 0
        %1743 = vmatpush1.bf16.xpose.msra.mxu0 0
        %1744 = vmatprep.mubr.bf16.mxu0 0
        %1745 = vmatmul.mubr.bf16.gmra.mrb[0].mxu0 %v1707
        %v1746 = vpop.f32.mrb[0].mxu0
        %v1747 = vadd.f32 0.0, %v1746
        %v1748 = vpop.f32.mrb[0].mxu0
        %v1749 = vpop.f32.mrb[0].mxu0
        %v1750 = vpop.f32.mrb[0].mxu0
        %1751 = vdwg.mxu0
        %v1753 = vsel %vm1659, %v1357, 0
        %v1756 = vsel %vm1659, %v1507, 0
        %1758 = vmatprep.subr.bf16.mxu0 0
        %1759 = vmatpush1.bf16.xpose.msra.mxu0 %v1756
        %1760 = vmatprep.subr.bf16.mxu0 0
        %1761 = vmatpush1.bf16.xpose.msra.mxu0 0
        %1762 = vmatprep.subr.bf16.mxu0 0
        %1763 = vmatpush1.bf16.xpose.msra.mxu0 0
        %1764 = vmatprep.subr.bf16.mxu0 0
        %1765 = vmatpush1.bf16.xpose.msra.mxu0 0
        %1766 = vmatprep.subr.bf16.mxu0 0
        %1767 = vmatpush1.bf16.xpose.msra.mxu0 0
        %1768 = vmatprep.subr.bf16.mxu0 0
        %1769 = vmatpush1.bf16.xpose.msra.mxu0 0
        %1770 = vmatprep.subr.bf16.mxu0 0
        %1771 = vmatpush1.bf16.xpose.msra.mxu0 0
        %1772 = vmatprep.subr.bf16.mxu0 0
        %1773 = vmatpush1.bf16.xpose.msra.mxu0 0
        %1774 = vmatprep.subr.bf16.mxu0 0
        %1775 = vmatpush1.bf16.xpose.msra.mxu0 0
        %1776 = vmatprep.subr.bf16.mxu0 0
        %1777 = vmatpush1.bf16.xpose.msra.mxu0 0
        %1778 = vmatprep.subr.bf16.mxu0 0
        %1779 = vmatpush1.bf16.xpose.msra.mxu0 0
        %1780 = vmatprep.subr.bf16.mxu0 0
        %1781 = vmatpush1.bf16.xpose.msra.mxu0 0
        %1782 = vmatprep.subr.bf16.mxu0 0
        %1783 = vmatpush1.bf16.xpose.msra.mxu0 0
        %1784 = vmatprep.subr.bf16.mxu0 0
        %1785 = vmatpush1.bf16.xpose.msra.mxu0 0
        %1786 = vmatprep.subr.bf16.mxu0 0
        %1787 = vmatpush1.bf16.xpose.msra.mxu0 0
        %1788 = vmatprep.subr.bf16.mxu0 0
        %1789 = vmatpush1.bf16.xpose.msra.mxu0 0
        %1790 = vmatprep.mubr.bf16.mxu0 0
        %1791 = vmatmul.mubr.bf16.gmra.mrb[0].mxu0 %v1753
        %v1792 = vpop.f32.mrb[0].mxu0
        %v1793 = vadd.f32 0.0, %v1792
        %v1794 = vpop.f32.mrb[0].mxu0
        %v1795 = vpop.f32.mrb[0].mxu0
        %v1796 = vpop.f32.mrb[0].mxu0
        %1797 = vdwg.mxu0
        %v1799 = vsel %vm1659, %v1358, 0
        %v1802 = vsel %vm1659, %v1508, 0
        %1804 = vmatprep.subr.bf16.mxu0 0
        %1805 = vmatpush1.bf16.xpose.msra.mxu0 %v1802
        %1806 = vmatprep.subr.bf16.mxu0 0
        %1807 = vmatpush1.bf16.xpose.msra.mxu0 0
        %1808 = vmatprep.subr.bf16.mxu0 0
        %1809 = vmatpush1.bf16.xpose.msra.mxu0 0
        %1810 = vmatprep.subr.bf16.mxu0 0
        %1811 = vmatpush1.bf16.xpose.msra.mxu0 0
        %1812 = vmatprep.subr.bf16.mxu0 0
        %1813 = vmatpush1.bf16.xpose.msra.mxu0 0
        %1814 = vmatprep.subr.bf16.mxu0 0
        %1815 = vmatpush1.bf16.xpose.msra.mxu0 0
        %1816 = vmatprep.subr.bf16.mxu0 0
        %1817 = vmatpush1.bf16.xpose.msra.mxu0 0
        %1818 = vmatprep.subr.bf16.mxu0 0
        %1819 = vmatpush1.bf16.xpose.msra.mxu0 0
        %1820 = vmatprep.subr.bf16.mxu0 0
        %1821 = vmatpush1.bf16.xpose.msra.mxu0 0
        %1822 = vmatprep.subr.bf16.mxu0 0
        %1823 = vmatpush1.bf16.xpose.msra.mxu0 0
        %1824 = vmatprep.subr.bf16.mxu0 0
        %1825 = vmatpush1.bf16.xpose.msra.mxu0 0
        %1826 = vmatprep.subr.bf16.mxu0 0
        %1827 = vmatpush1.bf16.xpose.msra.mxu0 0
        %1828 = vmatprep.subr.bf16.mxu0 0
        %1829 = vmatpush1.bf16.xpose.msra.mxu0 0
        %1830 = vmatprep.subr.bf16.mxu0 0
        %1831 = vmatpush1.bf16.xpose.msra.mxu0 0
        %1832 = vmatprep.subr.bf16.mxu0 0
        %1833 = vmatpush1.bf16.xpose.msra.mxu0 0
        %1834 = vmatprep.subr.bf16.mxu0 0
        %1835 = vmatpush1.bf16.xpose.msra.mxu0 0
        %1836 = vmatprep.mubr.bf16.mxu0 0
        %1837 = vmatmul.mubr.bf16.gmra.mrb[0].mxu0 %v1799
        %v1838 = vpop.f32.mrb[0].mxu0
        %v1839 = vadd.f32 0.0, %v1838
        %v1840 = vpop.f32.mrb[0].mxu0
        %v1841 = vpop.f32.mrb[0].mxu0
        %v1842 = vpop.f32.mrb[0].mxu0
        %1843 = vdwg.mxu0
        %v1844 = vmul.f32 %v1701, 0.17677669
        %v1845 = vmul.f32 %v1747, 0.17677669
        %v1846 = vmul.f32 %v1793, 0.17677669
        %v1847 = vmul.f32 %v1839, 0.17677669
        %vm1848 = vcmask 64512
        %v1849 = vsel %vm1848, %v1844, -inf
        %1850 = vmax.xlane.f32.xlu0 %v1849
        %v1851 = vpop.xlane.xlu0 %1850
        %v1852 = vsel %vm1848, %v1845, -inf
        %1853 = vmax.xlane.f32.xlu0 %v1852
        %v1854 = vpop.xlane.xlu0 %1853
        %v1855 = vsel %vm1848, %v1846, -inf
        %1856 = vmax.xlane.f32.xlu0 %v1855
        %v1857 = vpop.xlane.xlu0 %1856
        %v1858 = vsel %vm1848, %v1847, -inf
        %1859 = vmax.xlane.f32.xlu0 %v1858
        %v1860 = vpop.xlane.xlu0 %1859
        %v1861 = vsub.f32 %v1844, %v1851
        %v1862 = vsub.f32 %v1845, %v1854
        %v1863 = vsub.f32 %v1846, %v1857
        %v1864 = vsub.f32 %v1847, %v1860
        %v1865 = vmul.f32 %v1861, 1.442695
        %v1866 = vpow.pop %v1865
        %v1867 = vmul.f32 %v1862, 1.442695
        %v1868 = vpow.pop %v1867
        %v1869 = vmul.f32 %v1863, 1.442695
        %v1870 = vpow.pop %v1869
        %v1871 = vmul.f32 %v1864, 1.442695
        %v1872 = vpow.pop %v1871
        %v1873 = vsel %vm1848, %v1866, 0.0
        %1874 = vadd.xlane.f32.xlu0 %v1873
        %v1875 = vpop.xlane.xlu0 %1874
        %v1876 = vsel %vm1848, %v1868, 0.0
        %1877 = vadd.xlane.f32.xlu0 %v1876
        %v1878 = vpop.xlane.xlu0 %1877
        %v1879 = vsel %vm1848, %v1870, 0.0
        %1880 = vadd.xlane.f32.xlu0 %v1879
        %v1881 = vpop.xlane.xlu0 %1880
        %v1882 = vsel %vm1848, %v1872, 0.0
        %1883 = vadd.xlane.f32.xlu0 %v1882
        %v1884 = vpop.xlane.xlu0 %1883
        %v1885 = vrcp.pop %v1875
        %v1886 = vrcp.pop %v1878
        %v1887 = vrcp.pop %v1881
        %v1888 = vrcp.pop %v1884
        %v1889 = vmul.f32 %v1866, %v1885
        %v1890 = vmul.f32 %v1868, %v1886
        %v1891 = vmul.f32 %v1870, %v1887
        %v1892 = vmul.f32 %v1872, %v1888
        %v1893 = vpack.c.bf16 %v1889, %v1889
        %v1894 = vpack.c.bf16 %v1890, %v1890
        %v1895 = vpack.c.bf16 %v1891, %v1891
        %v1896 = vpack.c.bf16 %v1892, %v1892
        %v1898 = vsel %vm1848, %v1893, 0
        %vm1900 = vcmask 1043456
        %v1902 = vsel %vm1900, %v1655, 0
        %1904 = vmatprep.subr.bf16.mxu0 0
        %1905 = vmatpush1.bf16.msra.mxu0 %v1902
        %1906 = vmatprep.subr.bf16.mxu0 0
        %1907 = vmatpush1.bf16.msra.mxu0 0
        %1908 = vmatprep.subr.bf16.mxu0 0
        %1909 = vmatpush1.bf16.msra.mxu0 0
        %1910 = vmatprep.subr.bf16.mxu0 0
        %1911 = vmatpush1.bf16.msra.mxu0 0
        %1912 = vmatprep.subr.bf16.mxu0 0
        %1913 = vmatpush1.bf16.msra.mxu0 0
        %1914 = vmatprep.subr.bf16.mxu0 0
        %1915 = vmatpush1.bf16.msra.mxu0 0
        %1916 = vmatprep.subr.bf16.mxu0 0
        %1917 = vmatpush1.bf16.msra.mxu0 0
        %1918 = vmatprep.subr.bf16.mxu0 0
        %1919 = vmatpush1.bf16.msra.mxu0 0
        %1920 = vmatprep.subr.bf16.mxu0 0
        %1921 = vmatpush1.bf16.msra.mxu0 0
        %1922 = vmatprep.subr.bf16.mxu0 0
        %1923 = vmatpush1.bf16.msra.mxu0 0
        %1924 = vmatprep.subr.bf16.mxu0 0
        %1925 = vmatpush1.bf16.msra.mxu0 0
        %1926 = vmatprep.subr.bf16.mxu0 0
        %1927 = vmatpush1.bf16.msra.mxu0 0
        %1928 = vmatprep.subr.bf16.mxu0 0
        %1929 = vmatpush1.bf16.msra.mxu0 0
        %1930 = vmatprep.subr.bf16.mxu0 0
        %1931 = vmatpush1.bf16.msra.mxu0 0
        %1932 = vmatprep.subr.bf16.mxu0 0
        %1933 = vmatpush1.bf16.msra.mxu0 0
        %1934 = vmatprep.subr.bf16.mxu0 0
        %1935 = vmatpush1.bf16.msra.mxu0 0
        %1936 = vmatprep.mubr.bf16.mxu0 0
        %1937 = vmatmul.mubr.bf16.gmra.mrb[0].mxu0 %v1898
        %v1938 = vpop.f32.mrb[0].mxu0
        %v1939 = vadd.f32 0.0, %v1938
        %v1940 = vpop.f32.mrb[0].mxu0
        %v1941 = vpop.f32.mrb[0].mxu0
        %v1942 = vpop.f32.mrb[0].mxu0
        %1943 = vdwg.mxu0
        %v1945 = vsel %vm1848, %v1894, 0
        %v1948 = vsel %vm1900, %v1656, 0
        %1950 = vmatprep.subr.bf16.mxu0 0
        %1951 = vmatpush1.bf16.msra.mxu0 %v1948
        %1952 = vmatprep.subr.bf16.mxu0 0
        %1953 = vmatpush1.bf16.msra.mxu0 0
        %1954 = vmatprep.subr.bf16.mxu0 0
        %1955 = vmatpush1.bf16.msra.mxu0 0
        %1956 = vmatprep.subr.bf16.mxu0 0
        %1957 = vmatpush1.bf16.msra.mxu0 0
        %1958 = vmatprep.subr.bf16.mxu0 0
        %1959 = vmatpush1.bf16.msra.mxu0 0
        %1960 = vmatprep.subr.bf16.mxu0 0
        %1961 = vmatpush1.bf16.msra.mxu0 0
        %1962 = vmatprep.subr.bf16.mxu0 0
        %1963 = vmatpush1.bf16.msra.mxu0 0
        %1964 = vmatprep.subr.bf16.mxu0 0
        %1965 = vmatpush1.bf16.msra.mxu0 0
        %1966 = vmatprep.subr.bf16.mxu0 0
        %1967 = vmatpush1.bf16.msra.mxu0 0
        %1968 = vmatprep.subr.bf16.mxu0 0
        %1969 = vmatpush1.bf16.msra.mxu0 0
        %1970 = vmatprep.subr.bf16.mxu0 0
        %1971 = vmatpush1.bf16.msra.mxu0 0
        %1972 = vmatprep.subr.bf16.mxu0 0
        %1973 = vmatpush1.bf16.msra.mxu0 0
        %1974 = vmatprep.subr.bf16.mxu0 0
        %1975 = vmatpush1.bf16.msra.mxu0 0
        %1976 = vmatprep.subr.bf16.mxu0 0
        %1977 = vmatpush1.bf16.msra.mxu0 0
        %1978 = vmatprep.subr.bf16.mxu0 0
        %1979 = vmatpush1.bf16.msra.mxu0 0
        %1980 = vmatprep.subr.bf16.mxu0 0
        %1981 = vmatpush1.bf16.msra.mxu0 0
        %1982 = vmatprep.mubr.bf16.mxu0 0
        %1983 = vmatmul.mubr.bf16.gmra.mrb[0].mxu0 %v1945
        %v1984 = vpop.f32.mrb[0].mxu0
        %v1985 = vadd.f32 0.0, %v1984
        %v1986 = vpop.f32.mrb[0].mxu0
        %v1987 = vpop.f32.mrb[0].mxu0
        %v1988 = vpop.f32.mrb[0].mxu0
        %1989 = vdwg.mxu0
        %v1991 = vsel %vm1848, %v1895, 0
        %v1994 = vsel %vm1900, %v1657, 0
        %1996 = vmatprep.subr.bf16.mxu0 0
        %1997 = vmatpush1.bf16.msra.mxu0 %v1994
        %1998 = vmatprep.subr.bf16.mxu0 0
        %1999 = vmatpush1.bf16.msra.mxu0 0
        %2000 = vmatprep.subr.bf16.mxu0 0
        %2001 = vmatpush1.bf16.msra.mxu0 0
        %2002 = vmatprep.subr.bf16.mxu0 0
        %2003 = vmatpush1.bf16.msra.mxu0 0
        %2004 = vmatprep.subr.bf16.mxu0 0
        %2005 = vmatpush1.bf16.msra.mxu0 0
        %2006 = vmatprep.subr.bf16.mxu0 0
        %2007 = vmatpush1.bf16.msra.mxu0 0
        %2008 = vmatprep.subr.bf16.mxu0 0
        %2009 = vmatpush1.bf16.msra.mxu0 0
        %2010 = vmatprep.subr.bf16.mxu0 0
        %2011 = vmatpush1.bf16.msra.mxu0 0
        %2012 = vmatprep.subr.bf16.mxu0 0
        %2013 = vmatpush1.bf16.msra.mxu0 0
        %2014 = vmatprep.subr.bf16.mxu0 0
        %2015 = vmatpush1.bf16.msra.mxu0 0
        %2016 = vmatprep.subr.bf16.mxu0 0
        %2017 = vmatpush1.bf16.msra.mxu0 0
        %2018 = vmatprep.subr.bf16.mxu0 0
        %2019 = vmatpush1.bf16.msra.mxu0 0
        %2020 = vmatprep.subr.bf16.mxu0 0
        %2021 = vmatpush1.bf16.msra.mxu0 0
        %2022 = vmatprep.subr.bf16.mxu0 0
        %2023 = vmatpush1.bf16.msra.mxu0 0
        %2024 = vmatprep.subr.bf16.mxu0 0
        %2025 = vmatpush1.bf16.msra.mxu0 0
        %2026 = vmatprep.subr.bf16.mxu0 0
        %2027 = vmatpush1.bf16.msra.mxu0 0
        %2028 = vmatprep.mubr.bf16.mxu0 0
        %2029 = vmatmul.mubr.bf16.gmra.mrb[0].mxu0 %v1991
        %v2030 = vpop.f32.mrb[0].mxu0
        %v2031 = vadd.f32 0.0, %v2030
        %v2032 = vpop.f32.mrb[0].mxu0
        %v2033 = vpop.f32.mrb[0].mxu0
        %v2034 = vpop.f32.mrb[0].mxu0
        %2035 = vdwg.mxu0
        %v2037 = vsel %vm1848, %v1896, 0
        %v2040 = vsel %vm1900, %v1658, 0
        %2042 = vmatprep.subr.bf16.mxu0 0
        %2043 = vmatpush1.bf16.msra.mxu0 %v2040
        %2044 = vmatprep.subr.bf16.mxu0 0
        %2045 = vmatpush1.bf16.msra.mxu0 0
        %2046 = vmatprep.subr.bf16.mxu0 0
        %2047 = vmatpush1.bf16.msra.mxu0 0
        %2048 = vmatprep.subr.bf16.mxu0 0
        %2049 = vmatpush1.bf16.msra.mxu0 0
        %2050 = vmatprep.subr.bf16.mxu0 0
        %2051 = vmatpush1.bf16.msra.mxu0 0
        %2052 = vmatprep.subr.bf16.mxu0 0
        %2053 = vmatpush1.bf16.msra.mxu0 0
        %2054 = vmatprep.subr.bf16.mxu0 0
        %2055 = vmatpush1.bf16.msra.mxu0 0
        %2056 = vmatprep.subr.bf16.mxu0 0
        %2057 = vmatpush1.bf16.msra.mxu0 0
        %2058 = vmatprep.subr.bf16.mxu0 0
        %2059 = vmatpush1.bf16.msra.mxu0 0
        %2060 = vmatprep.subr.bf16.mxu0 0
        %2061 = vmatpush1.bf16.msra.mxu0 0
        %2062 = vmatprep.subr.bf16.mxu0 0
        %2063 = vmatpush1.bf16.msra.mxu0 0
        %2064 = vmatprep.subr.bf16.mxu0 0
        %2065 = vmatpush1.bf16.msra.mxu0 0
        %2066 = vmatprep.subr.bf16.mxu0 0
        %2067 = vmatpush1.bf16.msra.mxu0 0
        %2068 = vmatprep.subr.bf16.mxu0 0
        %2069 = vmatpush1.bf16.msra.mxu0 0
        %2070 = vmatprep.subr.bf16.mxu0 0
        %2071 = vmatpush1.bf16.msra.mxu0 0
        %2072 = vmatprep.subr.bf16.mxu0 0
        %2073 = vmatpush1.bf16.msra.mxu0 0
        %2074 = vmatprep.mubr.bf16.mxu0 0
        %2075 = vmatmul.mubr.bf16.gmra.mrb[0].mxu0 %v2037
        %v2076 = vpop.f32.mrb[0].mxu0
        %v2077 = vadd.f32 0.0, %v2076
        %v2078 = vpop.f32.mrb[0].mxu0
        %v2079 = vpop.f32.mrb[0].mxu0
        %v2080 = vpop.f32.mrb[0].mxu0
        %2081 = vdwg.mxu0
        %v2082 = vcombine.low %v1939, %v2031
        %v2083 = vcombine.high %v1939, %v2031
        %v2085 = vunpack.c.l.s4 1983009808
        %v2086 = vunpack.c.0.s8 %v2085
        %v2087 = vlaneseq
        %v2088 = vshrl.u32 %v2087, 7
        %v2089 = vsub.s32 %v2086, %v2088
        %v2090 = vrot.slane %v2082, %v2089
        %v2092 = vunpack.c.l.s4 1983009808
        %v2093 = vunpack.c.0.s8 %v2092
        %v2094 = vlaneseq
        %v2095 = vshrl.u32 %v2094, 7
        %v2096 = vsub.s32 %v2093, %v2095
        %v2097 = vrot.slane %v2083, %v2096
        %v2098 = vcombine.low %v1985, %v2077
        %v2099 = vcombine.high %v1985, %v2077
        %v2101 = vunpack.c.l.s4 1983009808
        %v2102 = vunpack.c.0.s8 %v2101
        %v2103 = vlaneseq
        %v2104 = vshrl.u32 %v2103, 7
        %v2105 = vsub.s32 %v2102, %v2104
        %v2106 = vrot.slane %v2098, %v2105
        %v2108 = vunpack.c.l.s4 1983009808
        %v2109 = vunpack.c.0.s8 %v2108
        %v2110 = vlaneseq
        %v2111 = vshrl.u32 %v2110, 7
        %v2112 = vsub.s32 %v2109, %v2111
        %v2113 = vrot.slane %v2099, %v2112
        %v2114 = vcombine.low %v2090, %v2106
        %v2115 = vcombine.high %v2090, %v2106
        %v2117 = vunpack.c.l.s4 1934713408
        %v2118 = vunpack.c.0.s8 %v2117
        %v2119 = vlaneseq
        %v2120 = vshrl.u32 %v2119, 7
        %v2121 = vsub.s32 %v2118, %v2120
        %v2122 = vrot.slane %v2114, %v2121
        %v2124 = vunpack.c.l.s4 1934713408
        %v2125 = vunpack.c.0.s8 %v2124
        %v2126 = vlaneseq
        %v2127 = vshrl.u32 %v2126, 7
        %v2128 = vsub.s32 %v2125, %v2127
        %v2129 = vrot.slane %v2115, %v2128
        %v2130 = vcombine.low %v2097, %v2113
        %v2131 = vcombine.high %v2097, %v2113
        %v2133 = vunpack.c.l.s4 1934713408
        %v2134 = vunpack.c.0.s8 %v2133
        %v2135 = vlaneseq
        %v2136 = vshrl.u32 %v2135, 7
        %v2137 = vsub.s32 %v2134, %v2136
        %v2138 = vrot.slane %v2130, %v2137
        %v2140 = vunpack.c.l.s4 1934713408
        %v2141 = vunpack.c.0.s8 %v2140
        %v2142 = vlaneseq
        %v2143 = vshrl.u32 %v2142, 7
        %v2144 = vsub.s32 %v2141, %v2143
        %v2145 = vrot.slane %v2131, %v2144
        %v2146 = vcombine.high %v2122, 0.0
        %v2147 = vcombine.high %v2129, 0.0
        %v2148 = vcombine.high %v2138, 0.0
        %v2149 = vcombine.high %v2145, 0.0
        %v2150 = vcombine.low %v2122, %v2129
        %v2152 = vunpack.c.l.s4 1983009808
        %v2153 = vunpack.c.0.s8 %v2152
        %v2154 = vlaneseq
        %v2155 = vshrl.u32 %v2154, 7
        %v2156 = vsub.s32 %v2153, %v2155
        %v2157 = vrot.slane %v2150, %v2156
        %v2158 = vcombine.low %v2146, %v2147
        %v2160 = vunpack.c.l.s4 1983009808
        %v2161 = vunpack.c.0.s8 %v2160
        %v2162 = vlaneseq
        %v2163 = vshrl.u32 %v2162, 7
        %v2164 = vsub.s32 %v2161, %v2163
        %v2165 = vrot.slane %v2158, %v2164
        %v2166 = vcombine.low %v2138, %v2145
        %v2168 = vunpack.c.l.s4 1983009808
        %v2169 = vunpack.c.0.s8 %v2168
        %v2170 = vlaneseq
        %v2171 = vshrl.u32 %v2170, 7
        %v2172 = vsub.s32 %v2169, %v2171
        %v2173 = vrot.slane %v2166, %v2172
        %v2174 = vcombine.low %v2148, %v2149
        %v2176 = vunpack.c.l.s4 1983009808
        %v2177 = vunpack.c.0.s8 %v2176
        %v2178 = vlaneseq
        %v2179 = vshrl.u32 %v2178, 7
        %v2180 = vsub.s32 %v2177, %v2179
        %v2181 = vrot.slane %v2174, %v2180
        %v2182 = vcombine.low %v2157, %v2165
        %v2183 = vcombine.high %v2157, %v2165
        %v2185 = vunpack.c.l.s4 1934713408
        %v2186 = vunpack.c.0.s8 %v2185
        %v2187 = vlaneseq
        %v2188 = vshrl.u32 %v2187, 7
        %v2189 = vsub.s32 %v2186, %v2188
        %v2190 = vrot.slane %v2182, %v2189
        %v2192 = vunpack.c.l.s4 1934713408
        %v2193 = vunpack.c.0.s8 %v2192
        %v2194 = vlaneseq
        %v2195 = vshrl.u32 %v2194, 7
        %v2196 = vsub.s32 %v2193, %v2195
        %v2197 = vrot.slane %v2183, %v2196
        %v2198 = vcombine.low %v2173, %v2181
        %v2199 = vcombine.high %v2173, %v2181
        %v2201 = vunpack.c.l.s4 1934713408
        %v2202 = vunpack.c.0.s8 %v2201
        %v2203 = vlaneseq
        %v2204 = vshrl.u32 %v2203, 7
        %v2205 = vsub.s32 %v2202, %v2204
        %v2206 = vrot.slane %v2198, %v2205
        %v2208 = vunpack.c.l.s4 1934713408
        %v2209 = vunpack.c.0.s8 %v2208
        %v2210 = vlaneseq
        %v2211 = vshrl.u32 %v2210, 7
        %v2212 = vsub.s32 %v2209, %v2211
        %v2213 = vrot.slane %v2199, %v2212
        %v2214 = vcombine.low %v2190, %v2206
        %v2215 = vcombine.high %v2190, %v2206
        %v2216 = vcombine.low %v2197, %v2213
        %v2217 = vcombine.high %v2197, %v2213
        %2219 = vrot.lane.b32.xlu0 %v2215, 32
        %v2220 = vpop.permute.xlu0 %2219
        %2223 = vrot.lane.b32.xlu0 %v2216, 64
        %v2224 = vpop.permute.xlu0 %2223
        %2227 = vrot.lane.b32.xlu0 %v2217, 96
        %v2228 = vpop.permute.xlu0 %2227
        %v2230 = vsel %vm1659, %v2214, %v2220
        %vm2231 = vcmask 523264
        %v2232 = vsel %vm2231, %v2230, %v2224
        %vm2233 = vcmask 785408
        %v2234 = vsel %vm2233, %v2232, %v2228
        %v2235 = vpack.c.bf16 %v2234, %v2234
        %v2237 = vlaneseq
        %v2238 = vshrl.u32 %v2237, 7
        %v2239 = vsub.s32 0, %v2238
        %v2240 = vrot.slane %v847, %v2239
        %v2258 = vunpack.c.l.b16 %v831
        %v2259 = vunpack.c.l.b16 %v832
        %v2260 = vunpack.c.l.b16 %v833
        %v2261 = vunpack.c.l.b16 %v834
        %v2262 = vunpack.c.l.b16 %v835
        %v2263 = vunpack.c.l.b16 %v836
        %v2264 = vunpack.c.l.b16 %v837
        %v2265 = vunpack.c.l.b16 %v838
        %v2266 = vunpack.c.l.b16 %v839
        %v2267 = vunpack.c.l.b16 %v840
        %v2268 = vunpack.c.l.b16 %v841
        %v2269 = vunpack.c.l.b16 %v842
        %v2270 = vunpack.c.l.b16 %v843
        %v2271 = vunpack.c.l.b16 %v844
        %v2272 = vunpack.c.l.b16 %v845
        %v2273 = vunpack.c.l.b16 %v846
        %v2274 = vpack.c.b16 %v2259, %v2258
        %v2275 = vpack.c.b16 %v2261, %v2260
        %v2276 = vpack.c.b16 %v2263, %v2262
        %v2277 = vpack.c.b16 %v2265, %v2264
        %v2278 = vpack.c.b16 %v2267, %v2266
        %v2279 = vpack.c.b16 %v2269, %v2268
        %v2280 = vpack.c.b16 %v2271, %v2270
        %v2281 = vpack.c.b16 %v2273, %v2272
        %2290 = vmatprep.subr.bf16.mxu0 0
        %2291 = vmatpush1.bf16.msra.mxu0 %v2274
        %2292 = vmatprep.subr.bf16.mxu0 0
        %2293 = vmatpush1.bf16.msra.mxu0 %v2275
        %2294 = vmatprep.subr.bf16.mxu0 0
        %2295 = vmatpush1.bf16.msra.mxu0 %v2276
        %2296 = vmatprep.subr.bf16.mxu0 0
        %2297 = vmatpush1.bf16.msra.mxu0 %v2277
        %2298 = vmatprep.subr.bf16.mxu0 0
        %2299 = vmatpush1.bf16.msra.mxu0 %v2278
        %2300 = vmatprep.subr.bf16.mxu0 0
        %2301 = vmatpush1.bf16.msra.mxu0 %v2279
        %2302 = vmatprep.subr.bf16.mxu0 0
        %2303 = vmatpush1.bf16.msra.mxu0 %v2280
        %2304 = vmatprep.subr.bf16.mxu0 0
        %2305 = vmatpush1.bf16.msra.mxu0 %v2281
        %2306 = vmatprep.subr.bf16.mxu0 0
        %2307 = vmatpush1.bf16.msra.mxu0 0
        %2308 = vmatprep.subr.bf16.mxu0 0
        %2309 = vmatpush1.bf16.msra.mxu0 0
        %2310 = vmatprep.subr.bf16.mxu0 0
        %2311 = vmatpush1.bf16.msra.mxu0 0
        %2312 = vmatprep.subr.bf16.mxu0 0
        %2313 = vmatpush1.bf16.msra.mxu0 0
        %2314 = vmatprep.subr.bf16.mxu0 0
        %2315 = vmatpush1.bf16.msra.mxu0 0
        %2316 = vmatprep.subr.bf16.mxu0 0
        %2317 = vmatpush1.bf16.msra.mxu0 0
        %2318 = vmatprep.subr.bf16.mxu0 0
        %2319 = vmatpush1.bf16.msra.mxu0 0
        %2320 = vmatprep.subr.bf16.mxu0 0
        %2321 = vmatpush1.bf16.msra.mxu0 0
        %2322 = vmatprep.mubr.bf16.mxu0 0
        %2323 = vmatmul.mubr.bf16.gmra.mrb[0].mxu0 %v2235
        %v2324 = vpop.f32.mrb[0].mxu0
        %v2325 = vadd.f32 %v2240, %v2324
        %v2326 = vpop.f32.mrb[0].mxu0
        %v2327 = vpop.f32.mrb[0].mxu0
        %v2328 = vpop.f32.mrb[0].mxu0
        %2329 = vdwg.mxu0
        %v2330 = vadd.f32 %v2325, %v777
        %2331 = vadd.xlane.f32.xlu0 %v2330
        %v2332 = vpop.xlane.xlu0 %2331
        %v2333 = vmul.f32 %v2332, %v902
        %v2334 = vsub.f32 %v2330, %v2333
        %v2335 = vmul.f32 %v2334, %v2334
        %2336 = vadd.xlane.f32.xlu0 %v2335
        %v2337 = vpop.xlane.xlu0 %2336
        %v2338 = vmul.f32 %v2337, %v902
        %v2339 = vadd.f32 %v2338, 1e-12
        %v2340 = vrsqrt.pop %v2339
        %v2341 = vmul.f32 %v2334, %v2340
        %v2343 = vlaneseq
        %v2344 = vshrl.u32 %v2343, 7
        %v2345 = vsub.s32 0, %v2344
        %v2346 = vrot.slane %v848, %v2345
        %v2348 = vmul.f32 %v2341, %v2346
        %v2350 = vlaneseq
        %v2351 = vshrl.u32 %v2350, 7
        %v2352 = vsub.s32 0, %v2351
        %v2353 = vrot.slane %v849, %v2352
        %v2355 = vadd.f32 %v2348, %v2353
        %v2356 = vpack.c.bf16 %v2355, %v2355
        %v2358 = vlaneseq
        %v2359 = vshrl.u32 %v2358, 7
        %v2360 = vsub.s32 0, %v2359
        %v2361 = vrot.slane %v866, %v2360
        %v2362 = vlaneseq
        %v2363 = vshrl.u32 %v2362, 7
        %v2364 = vsub.s32 1, %v2363
        %v2365 = vrot.slane %v866, %v2364
        %v2384 = vunpack.c.l.b16 %v850
        %v2385 = vunpack.c.h.b16 %v850
        %v2386 = vunpack.c.l.b16 %v851
        %v2387 = vunpack.c.h.b16 %v851
        %v2388 = vunpack.c.l.b16 %v852
        %v2389 = vunpack.c.h.b16 %v852
        %v2390 = vunpack.c.l.b16 %v853
        %v2391 = vunpack.c.h.b16 %v853
        %v2392 = vunpack.c.l.b16 %v854
        %v2393 = vunpack.c.h.b16 %v854
        %v2394 = vunpack.c.l.b16 %v855
        %v2395 = vunpack.c.h.b16 %v855
        %v2396 = vunpack.c.l.b16 %v856
        %v2397 = vunpack.c.h.b16 %v856
        %v2398 = vunpack.c.l.b16 %v857
        %v2399 = vunpack.c.h.b16 %v857
        %v2400 = vunpack.c.l.b16 %v858
        %v2401 = vunpack.c.h.b16 %v858
        %v2402 = vunpack.c.l.b16 %v859
        %v2403 = vunpack.c.h.b16 %v859
        %v2404 = vunpack.c.l.b16 %v860
        %v2405 = vunpack.c.h.b16 %v860
        %v2406 = vunpack.c.l.b16 %v861
        %v2407 = vunpack.c.h.b16 %v861
        %v2408 = vunpack.c.l.b16 %v862
        %v2409 = vunpack.c.h.b16 %v862
        %v2410 = vunpack.c.l.b16 %v863
        %v2411 = vunpack.c.h.b16 %v863
        %v2412 = vunpack.c.l.b16 %v864
        %v2413 = vunpack.c.h.b16 %v864
        %v2414 = vunpack.c.l.b16 %v865
        %v2415 = vunpack.c.h.b16 %v865
        %v2416 = vpack.c.b16 %v2386, %v2384
        %v2417 = vpack.c.b16 %v2387, %v2385
        %v2418 = vpack.c.b16 %v2390, %v2388
        %v2419 = vpack.c.b16 %v2391, %v2389
        %v2420 = vpack.c.b16 %v2394, %v2392
        %v2421 = vpack.c.b16 %v2395, %v2393
        %v2422 = vpack.c.b16 %v2398, %v2396
        %v2423 = vpack.c.b16 %v2399, %v2397
        %v2424 = vpack.c.b16 %v2402, %v2400
        %v2425 = vpack.c.b16 %v2403, %v2401
        %v2426 = vpack.c.b16 %v2406, %v2404
        %v2427 = vpack.c.b16 %v2407, %v2405
        %v2428 = vpack.c.b16 %v2410, %v2408
        %v2429 = vpack.c.b16 %v2411, %v2409
        %v2430 = vpack.c.b16 %v2414, %v2412
        %v2431 = vpack.c.b16 %v2415, %v2413
        %2448 = vmatprep.subr.bf16.mxu0 %v2417
        %2449 = vmatpush1.bf16.msra.mxu0 %v2416
        %2450 = vmatprep.subr.bf16.mxu0 %v2419
        %2451 = vmatpush1.bf16.msra.mxu0 %v2418
        %2452 = vmatprep.subr.bf16.mxu0 %v2421
        %2453 = vmatpush1.bf16.msra.mxu0 %v2420
        %2454 = vmatprep.subr.bf16.mxu0 %v2423
        %2455 = vmatpush1.bf16.msra.mxu0 %v2422
        %2456 = vmatprep.subr.bf16.mxu0 %v2425
        %2457 = vmatpush1.bf16.msra.mxu0 %v2424
        %2458 = vmatprep.subr.bf16.mxu0 %v2427
        %2459 = vmatpush1.bf16.msra.mxu0 %v2426
        %2460 = vmatprep.subr.bf16.mxu0 %v2429
        %2461 = vmatpush1.bf16.msra.mxu0 %v2428
        %2462 = vmatprep.subr.bf16.mxu0 %v2431
        %2463 = vmatpush1.bf16.msra.mxu0 %v2430
        %2464 = vmatprep.subr.bf16.mxu0 0
        %2465 = vmatpush1.bf16.msra.mxu0 0
        %2466 = vmatprep.subr.bf16.mxu0 0
        %2467 = vmatpush1.bf16.msra.mxu0 0
        %2468 = vmatprep.subr.bf16.mxu0 0
        %2469 = vmatpush1.bf16.msra.mxu0 0
        %2470 = vmatprep.subr.bf16.mxu0 0
        %2471 = vmatpush1.bf16.msra.mxu0 0
        %2472 = vmatprep.subr.bf16.mxu0 0
        %2473 = vmatpush1.bf16.msra.mxu0 0
        %2474 = vmatprep.subr.bf16.mxu0 0
        %2475 = vmatpush1.bf16.msra.mxu0 0
        %2476 = vmatprep.subr.bf16.mxu0 0
        %2477 = vmatpush1.bf16.msra.mxu0 0
        %2478 = vmatprep.subr.bf16.mxu0 0
        %2479 = vmatpush1.bf16.msra.mxu0 0
        %2480 = vmatprep.mubr.bf16.mxu0 0
        %2481 = vmatmul.mubr.bf16.gmra.mrb[0].mxu0 %v2356
        %v2482 = vpop.f32.mrb[0].mxu0
        %v2483 = vadd.f32 %v2361, %v2482
        %v2484 = vpop.f32.mrb[0].mxu0
        %v2485 = vadd.f32 %v2365, %v2484
        %v2486 = vpop.f32.mrb[0].mxu0
        %v2487 = vpop.f32.mrb[0].mxu0
        %2488 = vdwg.mxu0
        %v2489 = vmul.f32 %v2483, %v2483
        %v2490 = vmul.f32 %v2485, %v2485
        %v2491 = vmul.f32 %v2483, %v2489
        %v2492 = vmul.f32 %v2485, %v2490
        %v2493 = vmul.f32 %v2491, 0.044715
        %v2494 = vmul.f32 %v2492, 0.044715
        %v2495 = vadd.f32 %v2483, %v2493
        %v2496 = vadd.f32 %v2485, %v2494
        %v2497 = vmul.f32 %v2495, 0.7978846
        %v2498 = vmul.f32 %v2496, 0.7978846
        %v2499 = vtanh.pop %v2497
        %v2500 = vtanh.pop %v2498
        %v2501 = vadd.f32 %v2499, 1.0
        %v2502 = vadd.f32 %v2500, 1.0
        %v2503 = vmul.f32 %v2501, 0.5
        %v2504 = vmul.f32 %v2502, 0.5
        %v2505 = vmul.f32 %v2483, %v2503
        %v2506 = vmul.f32 %v2485, %v2504
        %v2507 = vpack.c.bf16 %v2505, %v2505
        %v2508 = vpack.c.bf16 %v2506, %v2506
        %v2510 = vlaneseq
        %v2511 = vshrl.u32 %v2510, 7
        %v2512 = vsub.s32 0, %v2511
        %v2513 = vrot.slane %v899, %v2512
        %v2547 = vunpack.c.l.b16 %v867
        %v2548 = vunpack.c.l.b16 %v868
        %v2549 = vunpack.c.l.b16 %v869
        %v2550 = vunpack.c.l.b16 %v870
        %v2551 = vunpack.c.l.b16 %v871
        %v2552 = vunpack.c.l.b16 %v872
        %v2553 = vunpack.c.l.b16 %v873
        %v2554 = vunpack.c.l.b16 %v874
        %v2555 = vunpack.c.l.b16 %v875
        %v2556 = vunpack.c.l.b16 %v876
        %v2557 = vunpack.c.l.b16 %v877
        %v2558 = vunpack.c.l.b16 %v878
        %v2559 = vunpack.c.l.b16 %v879
        %v2560 = vunpack.c.l.b16 %v880
        %v2561 = vunpack.c.l.b16 %v881
        %v2562 = vunpack.c.l.b16 %v882
        %v2563 = vunpack.c.l.b16 %v883
        %v2564 = vunpack.c.l.b16 %v884
        %v2565 = vunpack.c.l.b16 %v885
        %v2566 = vunpack.c.l.b16 %v886
        %v2567 = vunpack.c.l.b16 %v887
        %v2568 = vunpack.c.l.b16 %v888
        %v2569 = vunpack.c.l.b16 %v889
        %v2570 = vunpack.c.l.b16 %v890
        %v2571 = vunpack.c.l.b16 %v891
        %v2572 = vunpack.c.l.b16 %v892
        %v2573 = vunpack.c.l.b16 %v893
        %v2574 = vunpack.c.l.b16 %v894
        %v2575 = vunpack.c.l.b16 %v895
        %v2576 = vunpack.c.l.b16 %v896
        %v2577 = vunpack.c.l.b16 %v897
        %v2578 = vunpack.c.l.b16 %v898
        %v2579 = vpack.c.b16 %v2548, %v2547
        %v2580 = vpack.c.b16 %v2550, %v2549
        %v2581 = vpack.c.b16 %v2552, %v2551
        %v2582 = vpack.c.b16 %v2554, %v2553
        %v2583 = vpack.c.b16 %v2556, %v2555
        %v2584 = vpack.c.b16 %v2558, %v2557
        %v2585 = vpack.c.b16 %v2560, %v2559
        %v2586 = vpack.c.b16 %v2562, %v2561
        %v2587 = vpack.c.b16 %v2564, %v2563
        %v2588 = vpack.c.b16 %v2566, %v2565
        %v2589 = vpack.c.b16 %v2568, %v2567
        %v2590 = vpack.c.b16 %v2570, %v2569
        %v2591 = vpack.c.b16 %v2572, %v2571
        %v2592 = vpack.c.b16 %v2574, %v2573
        %v2593 = vpack.c.b16 %v2576, %v2575
        %v2594 = vpack.c.b16 %v2578, %v2577
        %2611 = vmatprep.subr.bf16.mxu0 0
        %2612 = vmatpush1.bf16.msra.mxu0 %v2579
        %2613 = vmatprep.subr.bf16.mxu0 0
        %2614 = vmatpush1.bf16.msra.mxu0 %v2580
        %2615 = vmatprep.subr.bf16.mxu0 0
        %2616 = vmatpush1.bf16.msra.mxu0 %v2581
        %2617 = vmatprep.subr.bf16.mxu0 0
        %2618 = vmatpush1.bf16.msra.mxu0 %v2582
        %2619 = vmatprep.subr.bf16.mxu0 0
        %2620 = vmatpush1.bf16.msra.mxu0 %v2583
        %2621 = vmatprep.subr.bf16.mxu0 0
        %2622 = vmatpush1.bf16.msra.mxu0 %v2584
        %2623 = vmatprep.subr.bf16.mxu0 0
        %2624 = vmatpush1.bf16.msra.mxu0 %v2585
        %2625 = vmatprep.subr.bf16.mxu0 0
        %2626 = vmatpush1.bf16.msra.mxu0 %v2586
        %2627 = vmatprep.subr.bf16.mxu0 0
        %2628 = vmatpush1.bf16.msra.mxu0 %v2587
        %2629 = vmatprep.subr.bf16.mxu0 0
        %2630 = vmatpush1.bf16.msra.mxu0 %v2588
        %2631 = vmatprep.subr.bf16.mxu0 0
        %2632 = vmatpush1.bf16.msra.mxu0 %v2589
        %2633 = vmatprep.subr.bf16.mxu0 0
        %2634 = vmatpush1.bf16.msra.mxu0 %v2590
        %2635 = vmatprep.subr.bf16.mxu0 0
        %2636 = vmatpush1.bf16.msra.mxu0 %v2591
        %2637 = vmatprep.subr.bf16.mxu0 0
        %2638 = vmatpush1.bf16.msra.mxu0 %v2592
        %2639 = vmatprep.subr.bf16.mxu0 0
        %2640 = vmatpush1.bf16.msra.mxu0 %v2593
        %2641 = vmatprep.subr.bf16.mxu0 0
        %2642 = vmatpush1.bf16.msra.mxu0 %v2594
        %2643 = vmatprep.mubr.bf16.mxu0 %v2508
        %2644 = vmatmul.mubr.bf16.gmra.mrb[0].mxu0 %v2507
        %v2645 = vpop.f32.mrb[0].mxu0
        %v2646 = vadd.f32 %v2513, %v2645
        %v2647 = vpop.f32.mrb[0].mxu0
        %v2648 = vpop.f32.mrb[0].mxu0
        %v2649 = vpop.f32.mrb[0].mxu0
        %2650 = vdwg.mxu0
        %v2651 = vadd.f32 %v2646, %v2330
        %2652 = vst [vmem:[%s775] sm:$0xff] %v2651
        %s2653 = sand.u32 %s412, 1
        %s2654 = scalar_lea.sflag [#allocation4], %s2653
        %s2655 = sand.u32 %s412, 1
        %s2656 = smul.addr %s2655, 8
        %s2657 = scalar_lea.vmem [#allocation29], %s2656
        // Predicated region
        $region157: #{fwd.2} parent=87 // pred_check
          %p2658 = pneg %p422
        $region158: #{fwd.2} parent=87 // pred_check_branch
          %2660 = sbr.rel (%p2658) target = $region160
        $region159: #{fwd.2} parent=87 // pred_region
          %s2662 = ssub.s32 128, 128
          %2663 = vsyncadd %s2654, %s2662
          %s2664 = smul.addr %s42, 128
          %s2665 = scalar_lea.hbm %s17, %s2664
          %s2667 = sshll.u32 %s2657, 4
          %s2668 = int_to_ptr.vmem [resolvable:$true] %s2667
          %2670 = dma.vmem_to_hbm [thread:$0]  %s2668, 128, %s2665, %s2654
        $region160: #{fwd.2} parent=87 // pred_fallthru
          _
      $region88: #{fwd.2} parent=5 // pred_fallthru
        _
      %p2671 = scmp.le.s32.totalorder 2, %s37
      // Predicated region
      $region161: #{fwd.2} parent=5 // pred_check
        %p2672 = pneg %p2671
      $region162: #{fwd.2} parent=5 // pred_check_branch
        %2674 = sbr.rel (%p2672) target = $region164
      $region163: #{fwd.2} parent=5 // pred_region
        %s2675 = ssub.s32 %s37, 2
        // Predicated region
        $region165: #{fwd.2} parent=163 // pred_check
          %p2676 = pneg %p428
        $region166: #{fwd.2} parent=163 // pred_check_branch
          %2678 = sbr.rel (%p2676) target = $region168
        $region167: #{fwd.2} parent=163 // pred_region
          %s2679 = sand.u32 %s413, 1
          %s2680 = scalar_lea.sflag [#allocation4], %s2679
          %s2681 = sand.u32 %s413, 1
          %s2682 = smul.addr %s2681, 8
          %s2683 = scalar_lea.vmem [#allocation29], %s2682
          %2684 = dma.done %s2680, 128
        $region168: #{fwd.2} parent=163 // pred_fallthru
          _
      $region164: #{fwd.2} parent=5 // pred_fallthru
        _
    $region6: #{fwd.2} parent=1 // loop_footer
      %s41 = sadd.s32 1, %s37
    $region7: #{fwd.2} parent=1 // loop_footer_branch
      %36 = sbr.rel target = $region3
    $region8: #{fwd.2} parent=1 // loop_exit
      _
    %2685 = vsyncpa [#allocation3], 1
    %s2686 = scalar_lea.sflag [#allocation3], 1
    %2687 = vsyncpa %s2686, 1
    %2688 = vsyncpa [#allocation6], 1
    %2689 = vsyncpa [#allocation9], 1
    %2690 = vsyncpa [#allocation12], 1
    %2691 = vsyncpa [#allocation15], 1
    %2692 = vsyncpa [#allocation18], 1
    %2693 = vsyncpa [#allocation21], 1
    %2694 = vsyncpa [#allocation24], 1
    %2695 = vsyncpa [#allocation27], 1
    %2696 = vsyncpa [#allocation4], 1
    %s2697 = scalar_lea.sflag [#allocation4], 1
    %2698 = vsyncpa %s2697, 1

</llo_original>
